<compile_context>
chip_gen: v7x
topology: tpu7x:2x2x1
jax: 0.10.0
libtpu: 0.0.40
codegen_flags: <defaults>
</compile_context>

<pallas_src>
import math

import jax
import jax.numpy as jnp
from jax.experimental import pallas as pl
from jax.experimental.pallas import tpu as pltpu


# ----------------------------------------------------------------------------
# Pallas kernel: one block of bt_tile (b, t) slices of full-GAT attention.
# ----------------------------------------------------------------------------
def _sparse_spatial_attn_kernel(x_ref, eig_ref, w_ref, b_ref, out_ref):
    bt, n, d = x_ref.shape

    # x + eigvec^T @ diag(eigvalue)   (eig term broadcast over the bt dim)
    x_ = x_ref[...] + eig_ref[...]                 # [bt, N, D]
    xf = x_.reshape(bt * n, d)                     # flatten rows for the MXU

    def layernorm(z):                              # LayerNorm(affine=False), eps=1e-5
        mu = jnp.mean(z, axis=-1, keepdims=True)
        var = jnp.mean((z - mu) ** 2, axis=-1, keepdims=True)
        return (z - mu) * jax.lax.rsqrt(var + 1e-5)

    def lin(z, i):                                 # z @ W_i + b_i  (static index -> view)
        return jnp.dot(z, w_ref[i], preferred_element_type=jnp.float32) + b_ref[i]

    # q/k/v projections (FeedForward([D, D]) == plain Linear)
    q = lin(xf, 0).reshape(bt, n, d)
    k = lin(xf, 1).reshape(bt, n, d)
    v = lin(xf, 2).reshape(bt, n, d)

    # full GAT attention: softmax(Q K^T / sqrt(D)) V  (no explicit transpose)
    scale = 1.0 / math.sqrt(d)
    s = jnp.einsum("bnd,bmd->bnm", q, k, preferred_element_type=jnp.float32) * scale
    s_max = jnp.max(s, axis=-1, keepdims=True)
    p = jnp.exp(s - s_max)
    p = p * pl.reciprocal(jnp.sum(p, axis=-1, keepdims=True), approx=False)
    av = jnp.einsum("bnm,bmd->bnd", p, v, preferred_element_type=jnp.float32)

    avf = av.reshape(bt * n, d)

    # output projection + residual + LayerNorm   (w[3]/b[3] = ofc)
    o_ln = layernorm(lin(avf, 3) + xf)

    # ff = FeedForward([D, D, D], res_ln=True): Linear -> relu -> Linear, +res, LN
    h = jnp.maximum(lin(o_ln, 4), 0.0)
    y = lin(h, 5) + o_ln
    out_ref[...] = layernorm(y).reshape(bt, n, d)


# ----------------------------------------------------------------------------
# Wrapper
# ----------------------------------------------------------------------------
def sparse_spatial_attention(x, eigvec, eigvalue, params, bt_tile=None):
    """x: [B, T, N, D] float32, eigvec: [D, N, 1], eigvalue: [D]."""
    B, T, N, D = x.shape
    BT = B * T
    if bt_tile is None:
        # two grid steps -> shards across v7x's 2 TCs; on single-TC v5e/v6e it
        # is just 2 pipeline iterations. Everything easily fits in VMEM.
        bt_tile = BT // 2 if (BT % 2 == 0 and BT >= 2) else BT
    assert BT % bt_tile == 0, (BT, bt_tile)

    x_flat = x.reshape(BT, N, D)

    # eigvec.transpose(0,1).squeeze(-1) @ diag_embed(eigvalue)  ->  [N, D]
    eig = jnp.squeeze(jnp.transpose(eigvec, (1, 0, 2)), -1) * eigvalue[None, :]

    # pack parameters: [6, D, D] weights and [6, 1, D] biases
    w_stack = jnp.stack(
        [params["wq"], params["wk"], params["wv"],
         params["wo"], params["w1"], params["w2"]], axis=0)
    b_stack = jnp.stack(
        [params["bq"], params["bk"], params["bv"],
         params["bo"], params["b1"], params["b2"]], axis=0)

    grid_spec = pltpu.PrefetchScalarGridSpec(
        num_scalar_prefetch=0,
        grid=(BT // bt_tile,),
        in_specs=[
            pl.BlockSpec((bt_tile, N, D), lambda i: (i, 0, 0)),   # x
            pl.BlockSpec((N, D), lambda i: (0, 0)),               # eig term
            pl.BlockSpec((6, D, D), lambda i: (0, 0, 0)),         # stacked weights
            pl.BlockSpec((6, 1, D), lambda i: (0, 0, 0)),         # stacked biases
        ],
        out_specs=pl.BlockSpec((bt_tile, N, D), lambda i: (i, 0, 0)),
    )

    out = pl.pallas_call(
        _sparse_spatial_attn_kernel,
        out_shape=jax.ShapeDtypeStruct((BT, N, D), jnp.float32),
        grid_spec=grid_spec,
        compiler_params=pltpu.CompilerParams(
            dimension_semantics=("parallel",),
        ),
    )(x_flat, eig, w_stack, b_stack)
    return out.reshape(B, T, N, D)


# ----------------------------------------------------------------------------
# Pure-JAX reference (mirrors the PyTorch forward, 'use_full_GAT' branch)
# ----------------------------------------------------------------------------
def reference(x, eigvec, eigvalue, params):
    eig = jnp.squeeze(jnp.transpose(eigvec, (1, 0, 2)), -1) * eigvalue[None, :]
    x_ = x + eig[None, None]
    D = x.shape[-1]

    def lin(z, w, b):
        return z @ w + b

    def ln(z):
        mu = jnp.mean(z, axis=-1, keepdims=True)
        var = jnp.mean((z - mu) ** 2, axis=-1, keepdims=True)
        return (z - mu) / jnp.sqrt(var + 1e-5)

    q = lin(x_, params["wq"], params["bq"])
    k = lin(x_, params["wk"], params["bk"])
    v = lin(x_, params["wv"], params["bv"])
    s = jnp.einsum("btnd,btmd->btnm", q, k) / math.sqrt(D)
    p = jax.nn.softmax(s, axis=-1)
    av = jnp.einsum("btnm,btmd->btnd", p, v)
    o = ln(lin(av, params["wo"], params["bo"]) + x_)
    h = jax.nn.relu(lin(o, params["w1"], params["b1"]))
    y = lin(h, params["w2"], params["b2"]) + o
    return ln(y)


# ----------------------------------------------------------------------------
# Main
# ----------------------------------------------------------------------------
if __name__ == "__main__":
    B, T, N, D = 2, 4, 16, 32

    key = jax.random.PRNGKey(0)
    keys = jax.random.split(key, 16)

    scale = 1.0 / math.sqrt(D)
    params = {
        "wq": jax.random.normal(keys[0], (D, D), jnp.float32) * scale,
        "bq": jax.random.normal(keys[1], (1, D), jnp.float32) * 0.01,
        "wk": jax.random.normal(keys[2], (D, D), jnp.float32) * scale,
        "bk": jax.random.normal(keys[3], (1, D), jnp.float32) * 0.01,
        "wv": jax.random.normal(keys[4], (D, D), jnp.float32) * scale,
        "bv": jax.random.normal(keys[5], (1, D), jnp.float32) * 0.01,
        "wo": jax.random.normal(keys[6], (D, D), jnp.float32) * scale,
        "bo": jax.random.normal(keys[7], (1, D), jnp.float32) * 0.01,
        "w1": jax.random.normal(keys[8], (D, D), jnp.float32) * scale,
        "b1": jax.random.normal(keys[9], (1, D), jnp.float32) * 0.01,
        "w2": jax.random.normal(keys[10], (D, D), jnp.float32) * scale,
        "b2": jax.random.normal(keys[11], (1, D), jnp.float32) * 0.01,
    }
    # NOTE: self.proj and self.nodeselection params are only used by the
    # 'use_ESGAT' / 'use_subgraph' branches (not exercised here).

    x = jax.random.normal(keys[12], (B, T, N, D), jnp.float32)
    eigvec = jax.random.normal(keys[13], (D, N, 1), jnp.float32)
    eigvalue = jax.random.normal(keys[14], (D,), jnp.float32)

    out = sparse_spatial_attention(x, eigvec, eigvalue, params)
    out = jax.block_until_ready(out)

    ref = reference(x, eigvec, eigvalue, params)
    assert out.shape == (B, T, N, D)
    err = float(jnp.max(jnp.abs(out - ref)))
    assert err < 1e-4, err

    print("KERNEL_OK")
</pallas_src>

<mosaic_0001>
module attributes {stable_mosaic.version = 11 : i64} {
  func.func @_sparse_spatial_attn_kernel(%arg0: i32, %arg1: memref<4x16x32xf32, #tpu.memory_space<vmem>>, %arg2: memref<16x32xf32, #tpu.memory_space<vmem>>, %arg3: memref<6x32x32xf32, #tpu.memory_space<vmem>>, %arg4: memref<6x1x32xf32, #tpu.memory_space<vmem>>, %arg5: memref<4x16x32xf32, #tpu.memory_space<vmem>>) attributes {dimension_semantics = [#tpu.dimension_semantics<parallel>], iteration_bounds = array<i64: 2>, scalar_prefetch = 0 : i64, scratch_operands = 0 : i64, tpu.core_type = #tpu.core_type<tc>, window_params = [{transform_indices = @transform_0, window_bounds = array<i64: 4, 16, 32>}, {pipeline_mode = #tpu.pipeline_mode<synchronous>, transform_indices = @transform_1, window_bounds = array<i64: 16, 32>}, {pipeline_mode = #tpu.pipeline_mode<synchronous>, transform_indices = @transform_2, window_bounds = array<i64: 6, 32, 32>}, {pipeline_mode = #tpu.pipeline_mode<synchronous>, transform_indices = @transform_3, window_bounds = array<i64: 6, 1, 32>}, {transform_indices = @transform_4, window_bounds = array<i64: 4, 16, 32>}]} {
    %c0 = arith.constant 0 : index
    %c0_0 = arith.constant 0 : index
    %c0_1 = arith.constant 0 : index
    %0 = vector.load %arg1[%c0, %c0_0, %c0_1] : memref<4x16x32xf32, #tpu.memory_space<vmem>>, vector<4x16x32xf32>
    %c0_2 = arith.constant 0 : index
    %c0_3 = arith.constant 0 : index
    %1 = vector.load %arg2[%c0_2, %c0_3] : memref<16x32xf32, #tpu.memory_space<vmem>>, vector<16x32xf32>
    %2 = vector.shape_cast %1 : vector<16x32xf32> to vector<1x16x32xf32>
    %3 = vector.broadcast %2 : vector<1x16x32xf32> to vector<4x16x32xf32>
    %4 = arith.addf %0, %3 : vector<4x16x32xf32>
    %5 = vector.shape_cast %4 : vector<4x16x32xf32> to vector<64x32xf32>
    %c0_4 = arith.constant 0 : index
    %c0_5 = arith.constant 0 : index
    %c0_6 = arith.constant 0 : index
    %6 = vector.load %arg3[%c0_4, %c0_5, %c0_6] : memref<6x32x32xf32, #tpu.memory_space<vmem>>, vector<1x32x32xf32>
    %7 = vector.shape_cast %6 : vector<1x32x32xf32> to vector<32x32xf32>
    %cst = arith.constant dense<0.000000e+00> : vector<64x32xf32>
    %8 = tpu.matmul %5, %7, %cst {dimension_numbers = #tpu.dot_dimension_numbers<[1], [0], [0], [1], [0, 0, 1, 1], [], []>} : vector<64x32xf32>, vector<32x32xf32>, vector<64x32xf32> -> vector<64x32xf32>
    %c0_7 = arith.constant 0 : index
    %c0_8 = arith.constant 0 : index
    %c0_9 = arith.constant 0 : index
    %9 = vector.load %arg4[%c0_7, %c0_8, %c0_9] : memref<6x1x32xf32, #tpu.memory_space<vmem>>, vector<1x1x32xf32>
    %10 = vector.shape_cast %9 : vector<1x1x32xf32> to vector<1x32xf32>
    %11 = vector.broadcast %10 : vector<1x32xf32> to vector<64x32xf32>
    %12 = arith.addf %8, %11 : vector<64x32xf32>
    %13 = vector.shape_cast %12 : vector<64x32xf32> to vector<4x16x32xf32>
    %c1 = arith.constant 1 : index
    %c0_10 = arith.constant 0 : index
    %c0_11 = arith.constant 0 : index
    %14 = vector.load %arg3[%c1, %c0_10, %c0_11] : memref<6x32x32xf32, #tpu.memory_space<vmem>>, vector<1x32x32xf32>
    %15 = vector.shape_cast %14 : vector<1x32x32xf32> to vector<32x32xf32>
    %cst_12 = arith.constant dense<0.000000e+00> : vector<64x32xf32>
    %16 = tpu.matmul %5, %15, %cst_12 {dimension_numbers = #tpu.dot_dimension_numbers<[1], [0], [0], [1], [0, 0, 1, 1], [], []>} : vector<64x32xf32>, vector<32x32xf32>, vector<64x32xf32> -> vector<64x32xf32>
    %c1_13 = arith.constant 1 : index
    %c0_14 = arith.constant 0 : index
    %c0_15 = arith.constant 0 : index
    %17 = vector.load %arg4[%c1_13, %c0_14, %c0_15] : memref<6x1x32xf32, #tpu.memory_space<vmem>>, vector<1x1x32xf32>
    %18 = vector.shape_cast %17 : vector<1x1x32xf32> to vector<1x32xf32>
    %19 = vector.broadcast %18 : vector<1x32xf32> to vector<64x32xf32>
    %20 = arith.addf %16, %19 : vector<64x32xf32>
    %21 = vector.shape_cast %20 : vector<64x32xf32> to vector<4x16x32xf32>
    %c2 = arith.constant 2 : index
    %c0_16 = arith.constant 0 : index
    %c0_17 = arith.constant 0 : index
    %22 = vector.load %arg3[%c2, %c0_16, %c0_17] : memref<6x32x32xf32, #tpu.memory_space<vmem>>, vector<1x32x32xf32>
    %23 = vector.shape_cast %22 : vector<1x32x32xf32> to vector<32x32xf32>
    %cst_18 = arith.constant dense<0.000000e+00> : vector<64x32xf32>
    %24 = tpu.matmul %5, %23, %cst_18 {dimension_numbers = #tpu.dot_dimension_numbers<[1], [0], [0], [1], [0, 0, 1, 1], [], []>} : vector<64x32xf32>, vector<32x32xf32>, vector<64x32xf32> -> vector<64x32xf32>
    %c2_19 = arith.constant 2 : index
    %c0_20 = arith.constant 0 : index
    %c0_21 = arith.constant 0 : index
    %25 = vector.load %arg4[%c2_19, %c0_20, %c0_21] : memref<6x1x32xf32, #tpu.memory_space<vmem>>, vector<1x1x32xf32>
    %26 = vector.shape_cast %25 : vector<1x1x32xf32> to vector<1x32xf32>
    %27 = vector.broadcast %26 : vector<1x32xf32> to vector<64x32xf32>
    %28 = arith.addf %24, %27 : vector<64x32xf32>
    %29 = vector.shape_cast %28 : vector<64x32xf32> to vector<4x16x32xf32>
    "tpu.trace_start"() <{level = 10 : i32, message = "bnd,bmd->bnm"}> : () -> ()
    %cst_22 = arith.constant dense<0.000000e+00> : vector<4x16x16xf32>
    %30 = tpu.matmul %13, %21, %cst_22 {dimension_numbers = #tpu.dot_dimension_numbers<[2], [2], [1], [1], [0, 0, 0, 1, 1, 1], [0], [0]>} : vector<4x16x32xf32>, vector<4x16x32xf32>, vector<4x16x16xf32> -> vector<4x16x16xf32>
    "tpu.trace_stop"() : () -> ()
    %cst_23 = arith.constant 0.176776692 : f32
    %31 = vector.broadcast %cst_23 : f32 to vector<4x16x16xf32>
    %32 = arith.mulf %30, %31 : vector<4x16x16xf32>
    %cst_24 = arith.constant dense<0xFF800000> : vector<4x16xf32>
    %33 = vector.multi_reduction <maximumf>, %32, %cst_24 [2] : vector<4x16x16xf32> to vector<4x16xf32>
    %34 = vector.shape_cast %33 : vector<4x16xf32> to vector<4x16x1xf32>
    %35 = vector.broadcast %34 : vector<4x16x1xf32> to vector<4x16x16xf32>
    %36 = arith.subf %32, %35 : vector<4x16x16xf32>
    %37 = math.exp %36 : vector<4x16x16xf32>
    %cst_25 = arith.constant dense<0.000000e+00> : vector<4x16xf32>
    %38 = vector.multi_reduction <add>, %37, %cst_25 [2] : vector<4x16x16xf32> to vector<4x16xf32>
    %39 = vector.shape_cast %38 : vector<4x16xf32> to vector<4x16x1xf32>
    %40 = tpu.reciprocal %39 : vector<4x16x1xf32> -> vector<4x16x1xf32>
    %41 = vector.broadcast %40 : vector<4x16x1xf32> to vector<4x16x16xf32>
    %42 = arith.mulf %37, %41 : vector<4x16x16xf32>
    "tpu.trace_start"() <{level = 10 : i32, message = "bnm,bmd->bnd"}> : () -> ()
    %cst_26 = arith.constant dense<0.000000e+00> : vector<4x16x32xf32>
    %43 = tpu.matmul %42, %29, %cst_26 {dimension_numbers = #tpu.dot_dimension_numbers<[2], [1], [1], [2], [0, 0, 0, 1, 1, 2], [0], [0]>} : vector<4x16x16xf32>, vector<4x16x32xf32>, vector<4x16x32xf32> -> vector<4x16x32xf32>
    "tpu.trace_stop"() : () -> ()
    %44 = vector.shape_cast %43 : vector<4x16x32xf32> to vector<64x32xf32>
    %c3 = arith.constant 3 : index
    %c0_27 = arith.constant 0 : index
    %c0_28 = arith.constant 0 : index
    %45 = vector.load %arg3[%c3, %c0_27, %c0_28] : memref<6x32x32xf32, #tpu.memory_space<vmem>>, vector<1x32x32xf32>
    %46 = vector.shape_cast %45 : vector<1x32x32xf32> to vector<32x32xf32>
    %cst_29 = arith.constant dense<0.000000e+00> : vector<64x32xf32>
    %47 = tpu.matmul %44, %46, %cst_29 {dimension_numbers = #tpu.dot_dimension_numbers<[1], [0], [0], [1], [0, 0, 1, 1], [], []>} : vector<64x32xf32>, vector<32x32xf32>, vector<64x32xf32> -> vector<64x32xf32>
    %c3_30 = arith.constant 3 : index
    %c0_31 = arith.constant 0 : index
    %c0_32 = arith.constant 0 : index
    %48 = vector.load %arg4[%c3_30, %c0_31, %c0_32] : memref<6x1x32xf32, #tpu.memory_space<vmem>>, vector<1x1x32xf32>
    %49 = vector.shape_cast %48 : vector<1x1x32xf32> to vector<1x32xf32>
    %50 = vector.broadcast %49 : vector<1x32xf32> to vector<64x32xf32>
    %51 = arith.addf %47, %50 : vector<64x32xf32>
    %52 = arith.addf %51, %5 : vector<64x32xf32>
    %cst_33 = arith.constant dense<0.000000e+00> : vector<64xf32>
    %53 = vector.multi_reduction <add>, %52, %cst_33 [1] : vector<64x32xf32> to vector<64xf32>
    %54 = vector.shape_cast %53 : vector<64xf32> to vector<64x1xf32>
    %cst_34 = arith.constant 3.200000e+01 : f32
    %55 = vector.broadcast %cst_34 : f32 to vector<64x1xf32>
    %56 = arith.divf %54, %55 : vector<64x1xf32>
    %57 = vector.broadcast %56 : vector<64x1xf32> to vector<64x32xf32>
    %58 = arith.subf %52, %57 : vector<64x32xf32>
    %59 = arith.mulf %58, %58 : vector<64x32xf32>
    %cst_35 = arith.constant dense<0.000000e+00> : vector<64xf32>
    %60 = vector.multi_reduction <add>, %59, %cst_35 [1] : vector<64x32xf32> to vector<64xf32>
    %61 = vector.shape_cast %60 : vector<64xf32> to vector<64x1xf32>
    %cst_36 = arith.constant 3.200000e+01 : f32
    %62 = vector.broadcast %cst_36 : f32 to vector<64x1xf32>
    %63 = arith.divf %61, %62 : vector<64x1xf32>
    %64 = vector.broadcast %56 : vector<64x1xf32> to vector<64x32xf32>
    %65 = arith.subf %52, %64 : vector<64x32xf32>
    %cst_37 = arith.constant 9.99999974E-6 : f32
    %66 = vector.broadcast %cst_37 : f32 to vector<64x1xf32>
    %67 = arith.addf %63, %66 : vector<64x1xf32>
    %68 = math.rsqrt %67 : vector<64x1xf32>
    %69 = vector.broadcast %68 : vector<64x1xf32> to vector<64x32xf32>
    %70 = arith.mulf %65, %69 : vector<64x32xf32>
    %c4 = arith.constant 4 : index
    %c0_38 = arith.constant 0 : index
    %c0_39 = arith.constant 0 : index
    %71 = vector.load %arg3[%c4, %c0_38, %c0_39] : memref<6x32x32xf32, #tpu.memory_space<vmem>>, vector<1x32x32xf32>
    %72 = vector.shape_cast %71 : vector<1x32x32xf32> to vector<32x32xf32>
    %cst_40 = arith.constant dense<0.000000e+00> : vector<64x32xf32>
    %73 = tpu.matmul %70, %72, %cst_40 {dimension_numbers = #tpu.dot_dimension_numbers<[1], [0], [0], [1], [0, 0, 1, 1], [], []>} : vector<64x32xf32>, vector<32x32xf32>, vector<64x32xf32> -> vector<64x32xf32>
    %c4_41 = arith.constant 4 : index
    %c0_42 = arith.constant 0 : index
    %c0_43 = arith.constant 0 : index
    %74 = vector.load %arg4[%c4_41, %c0_42, %c0_43] : memref<6x1x32xf32, #tpu.memory_space<vmem>>, vector<1x1x32xf32>
    %75 = vector.shape_cast %74 : vector<1x1x32xf32> to vector<1x32xf32>
    %76 = vector.broadcast %75 : vector<1x32xf32> to vector<64x32xf32>
    %77 = arith.addf %73, %76 : vector<64x32xf32>
    %cst_44 = arith.constant 0.000000e+00 : f32
    %78 = vector.broadcast %cst_44 : f32 to vector<64x32xf32>
    %79 = arith.maximumf %77, %78 : vector<64x32xf32>
    %c5 = arith.constant 5 : index
    %c0_45 = arith.constant 0 : index
    %c0_46 = arith.constant 0 : index
    %80 = vector.load %arg3[%c5, %c0_45, %c0_46] : memref<6x32x32xf32, #tpu.memory_space<vmem>>, vector<1x32x32xf32>
    %81 = vector.shape_cast %80 : vector<1x32x32xf32> to vector<32x32xf32>
    %cst_47 = arith.constant dense<0.000000e+00> : vector<64x32xf32>
    %82 = tpu.matmul %79, %81, %cst_47 {dimension_numbers = #tpu.dot_dimension_numbers<[1], [0], [0], [1], [0, 0, 1, 1], [], []>} : vector<64x32xf32>, vector<32x32xf32>, vector<64x32xf32> -> vector<64x32xf32>
    %c5_48 = arith.constant 5 : index
    %c0_49 = arith.constant 0 : index
    %c0_50 = arith.constant 0 : index
    %83 = vector.load %arg4[%c5_48, %c0_49, %c0_50] : memref<6x1x32xf32, #tpu.memory_space<vmem>>, vector<1x1x32xf32>
    %84 = vector.shape_cast %83 : vector<1x1x32xf32> to vector<1x32xf32>
    %85 = vector.broadcast %84 : vector<1x32xf32> to vector<64x32xf32>
    %86 = arith.addf %82, %85 : vector<64x32xf32>
    %87 = arith.addf %86, %70 : vector<64x32xf32>
    %cst_51 = arith.constant dense<0.000000e+00> : vector<64xf32>
    %88 = vector.multi_reduction <add>, %87, %cst_51 [1] : vector<64x32xf32> to vector<64xf32>
    %89 = vector.shape_cast %88 : vector<64xf32> to vector<64x1xf32>
    %cst_52 = arith.constant 3.200000e+01 : f32
    %90 = vector.broadcast %cst_52 : f32 to vector<64x1xf32>
    %91 = arith.divf %89, %90 : vector<64x1xf32>
    %92 = vector.broadcast %91 : vector<64x1xf32> to vector<64x32xf32>
    %93 = arith.subf %87, %92 : vector<64x32xf32>
    %94 = arith.mulf %93, %93 : vector<64x32xf32>
    %cst_53 = arith.constant dense<0.000000e+00> : vector<64xf32>
    %95 = vector.multi_reduction <add>, %94, %cst_53 [1] : vector<64x32xf32> to vector<64xf32>
    %96 = vector.shape_cast %95 : vector<64xf32> to vector<64x1xf32>
    %cst_54 = arith.constant 3.200000e+01 : f32
    %97 = vector.broadcast %cst_54 : f32 to vector<64x1xf32>
    %98 = arith.divf %96, %97 : vector<64x1xf32>
    %99 = vector.broadcast %91 : vector<64x1xf32> to vector<64x32xf32>
    %100 = arith.subf %87, %99 : vector<64x32xf32>
    %cst_55 = arith.constant 9.99999974E-6 : f32
    %101 = vector.broadcast %cst_55 : f32 to vector<64x1xf32>
    %102 = arith.addf %98, %101 : vector<64x1xf32>
    %103 = math.rsqrt %102 : vector<64x1xf32>
    %104 = vector.broadcast %103 : vector<64x1xf32> to vector<64x32xf32>
    %105 = arith.mulf %100, %104 : vector<64x32xf32>
    %106 = vector.shape_cast %105 : vector<64x32xf32> to vector<4x16x32xf32>
    %c0_56 = arith.constant 0 : index
    %c0_57 = arith.constant 0 : index
    %c0_58 = arith.constant 0 : index
    %107 = vector.load %arg5[%c0_56, %c0_57, %c0_58] : memref<4x16x32xf32, #tpu.memory_space<vmem>>, vector<4x16x32xf32>
    tpu.vector_store %arg5[%c0_56, %c0_57, %c0_58], %106 {strides = array<i32>} : memref<4x16x32xf32, #tpu.memory_space<vmem>>, vector<4x16x32xf32>,
    return
  }
  func.func @transform_0(%arg0: i32) -> (i32, i32, i32) {
    %c0_i32 = arith.constant 0 : i32
    %c0_i32_0 = arith.constant 0 : i32
    %c0_i32_1 = arith.constant 0 : i32
    return %arg0, %c0_i32, %c0_i32_0 : i32, i32, i32
  }
  func.func @transform_1(%arg0: i32) -> (i32, i32) {
    %c0_i32 = arith.constant 0 : i32
    %c0_i32_0 = arith.constant 0 : i32
    %c0_i32_1 = arith.constant 0 : i32
    return %c0_i32, %c0_i32_0 : i32, i32
  }
  func.func @transform_2(%arg0: i32) -> (i32, i32, i32) {
    %c0_i32 = arith.constant 0 : i32
    %c0_i32_0 = arith.constant 0 : i32
    %c0_i32_1 = arith.constant 0 : i32
    %c0_i32_2 = arith.constant 0 : i32
    return %c0_i32, %c0_i32_0, %c0_i32_1 : i32, i32, i32
  }
  func.func @transform_3(%arg0: i32) -> (i32, i32, i32) {
    %c0_i32 = arith.constant 0 : i32
    %c0_i32_0 = arith.constant 0 : i32
    %c0_i32_1 = arith.constant 0 : i32
    %c0_i32_2 = arith.constant 0 : i32
    return %c0_i32, %c0_i32_0, %c0_i32_1 : i32, i32, i32
  }
  func.func @transform_4(%arg0: i32) -> (i32, i32, i32) {
    %c0_i32 = arith.constant 0 : i32
    %c0_i32_0 = arith.constant 0 : i32
    %c0_i32_1 = arith.constant 0 : i32
    return %arg0, %c0_i32, %c0_i32_0 : i32, i32, i32
  }
}

</mosaic_0001>

<llo_original>
// kernel: tpu_custom_call.1
$region0: #{tpu_custom_call.1}
  #allocation0 [shape = 'u32[]', space=smem, size = 0x4, offset = 0x4, fixed_abs, tag = 'smem constant byte address 0x4 - core index']
  #allocation1 [shape = 'u32[144,128]{1,0:T(1,128)}', space=vmem, size = 0x12000, scoped, tag = 'internal scratch']
  %s0 = inlined_call_operand.hbm [shape: f32[8,16,32], index: 0, kind: input, shape index: {}]
  %s1 = inlined_call_operand.hbm [shape: f32[16,32], index: 1, kind: input, shape index: {}]
  %s2 = inlined_call_operand.hbm [shape: f32[6,32,32], index: 2, kind: input, shape index: {}]
  %s3 = inlined_call_operand.vmem [shape: f32[6,1,32], index: 3, kind: input, shape index: {}]
  %s4 = inlined_call_operand.hbm [shape: f32[8,16,32], index: 4, kind: output, shape index: {}]
  %s5 = sld [smem:[#allocation0]]
  $region61: #{tpu_custom_call.1} parent=0
    _
  %s7 = ssub.s32 1, %s5
  %s8 = scalar_select 0, %s7, %s5
  $region1: #{tpu_custom_call.1} parent=0
    #allocation2 [shape = 'u8[65536]{0}', space=vmem, size = 0x10000, scoped, tag = 'input window, operand 0']
    #allocation3 [shape = 's32[2]{0}', space=sflag, size = 0x8, scoped, tag = 'scoped memory for tpu_custom_call.1']
    #allocation4 [shape = 's32[2]{0}', space=sflag, size = 0x8, scoped, tag = 'scoped memory for tpu_custom_call.1']
    #allocation5 [shape = 'u8[8192]{0}', space=vmem, size = 0x2000, scoped, tag = 'input window, operand 1, single buffered']
    #allocation6 [shape = 's32[1]{0}', space=sflag, size = 0x4, scoped, tag = 'scoped memory for tpu_custom_call.1']
    #allocation7 [shape = 'u8[98304]{0}', space=vmem, size = 0x18000, scoped, tag = 'input window, operand 2, single buffered']
    #allocation8 [shape = 'u8[65536]{0}', space=vmem, size = 0x10000, scoped, tag = 'output window, operand 0']
    %9 = vsyncpa [#allocation3], 0
    %s10 = scalar_lea.sflag [#allocation3], 1
    %11 = vsyncpa %s10, 0
    %12 = vsyncpa [#allocation6], 0
    %13 = vsyncpa [#allocation4], 0
    %s14 = scalar_lea.sflag [#allocation4], 1
    %15 = vsyncpa %s14, 0
    loop: start=0, step=1, limit=4
    $region2: #{tpu_custom_call.1} parent=1 // loop_pre_header
      _
    $region3: #{tpu_custom_call.1} parent=1 // loop_header
      %s17 = sphi 0, %s21
      %p18 = scmp.ge.s32.totalorder %s17, 4
      %s27 = sphi 0, %s29
      %s30 = sphi 0, %s27
      %s31 = sphi 0, %s30
      %s47 = sphi 0, %s31
      %s51 = sphi 0, %s51
      %s53 = sphi 0, %s51
      %s54 = sphi 0, %s53
      %s68 = sphi 0, %s54
      %s72 = sphi 0, %s72
      %s74 = sphi 0, %s72
      %s75 = sphi 0, %s74
      %s89 = sphi 0, %s75
      %s93 = sphi 0, %s93
      %s95 = sphi 0, %s93
      %s96 = sphi 0, %s95
      %s110 = sphi 0, %s96
      %s116 = sphi 0, %s118
      %s119 = sphi 0, %s116
      %s120 = sphi 0, %s119
      %s136 = sphi 0, %s120
    $region4: #{tpu_custom_call.1} parent=1 // loop_header_branch
      %20 = sbr.rel (%p18) target = $region8
    $region5: #{tpu_custom_call.1} parent=1 // loop_body
      %s22 = ssub.s32 %s17, 1
      %s23 = ssub.s32 %s17, 2
      %s24 = sadd.s32 %s17, 1
      %s25 = ssub.s32 %s17, %s24
      %p26 = scmp.eq.s32.totalorder %s25, 0
      %s28 = sadd.s32 %s27, 1
      %s29 = scalar_select %p26, %s27, %s28
      %p32 = pneg %p26
      %p33 = scmp.eq.s32.totalorder %s17, 1
      %p34 = por %p32, %p33
      %p35 = scmp.ne.s32.totalorder %s27, %s30
      %p36 = scmp.eq.s32.totalorder %s17, 0
      %p37 = por %p35, %p36
      %p38 = scmp.ne.s32.totalorder %s27, %s30
      %p39 = scmp.eq.s32.totalorder %s22, 1
      %p40 = por %p38, %p39
      %p41 = scmp.ne.s32.totalorder %s30, %s31
      %p42 = scmp.eq.s32.totalorder %s22, 0
      %p43 = por %p41, %p42
      %p44 = scmp.ne.s32.totalorder %s30, %s31
      %p45 = scmp.eq.s32.totalorder %s23, 1
      %p46 = por %p44, %p45
      %p48 = scmp.ne.s32.totalorder %s31, %s47
      %p49 = scmp.eq.s32.totalorder %s23, 0
      %p50 = por %p48, %p49
      %s52 = sadd.s32 %s51, 1
      %p55 = scmp.eq.s32.totalorder %s17, 1
      %p56 = scmp.ne.s32.totalorder %s51, %s53
      %p57 = scmp.eq.s32.totalorder %s17, 0
      %p58 = por %p56, %p57
      %p59 = scmp.ne.s32.totalorder %s51, %s53
      %p60 = scmp.eq.s32.totalorder %s22, 1
      %p61 = por %p59, %p60
      %p62 = scmp.ne.s32.totalorder %s53, %s54
      %p63 = scmp.eq.s32.totalorder %s22, 0
      %p64 = por %p62, %p63
      %p65 = scmp.ne.s32.totalorder %s53, %s54
      %p66 = scmp.eq.s32.totalorder %s23, 1
      %p67 = por %p65, %p66
      %p69 = scmp.ne.s32.totalorder %s54, %s68
      %p70 = scmp.eq.s32.totalorder %s23, 0
      %p71 = por %p69, %p70
      %s73 = sadd.s32 %s72, 1
      %p76 = scmp.eq.s32.totalorder %s17, 1
      %p77 = scmp.ne.s32.totalorder %s72, %s74
      %p78 = scmp.eq.s32.totalorder %s17, 0
      %p79 = por %p77, %p78
      %p80 = scmp.ne.s32.totalorder %s72, %s74
      %p81 = scmp.eq.s32.totalorder %s22, 1
      %p82 = por %p80, %p81
      %p83 = scmp.ne.s32.totalorder %s74, %s75
      %p84 = scmp.eq.s32.totalorder %s22, 0
      %p85 = por %p83, %p84
      %p86 = scmp.ne.s32.totalorder %s74, %s75
      %p87 = scmp.eq.s32.totalorder %s23, 1
      %p88 = por %p86, %p87
      %p90 = scmp.ne.s32.totalorder %s75, %s89
      %p91 = scmp.eq.s32.totalorder %s23, 0
      %p92 = por %p90, %p91
      %s94 = sadd.s32 %s93, 1
      %p97 = scmp.eq.s32.totalorder %s17, 1
      %p98 = scmp.ne.s32.totalorder %s93, %s95
      %p99 = scmp.eq.s32.totalorder %s17, 0
      %p100 = por %p98, %p99
      %p101 = scmp.ne.s32.totalorder %s93, %s95
      %p102 = scmp.eq.s32.totalorder %s22, 1
      %p103 = por %p101, %p102
      %p104 = scmp.ne.s32.totalorder %s95, %s96
      %p105 = scmp.eq.s32.totalorder %s22, 0
      %p106 = por %p104, %p105
      %p107 = scmp.ne.s32.totalorder %s95, %s96
      %p108 = scmp.eq.s32.totalorder %s23, 1
      %p109 = por %p107, %p108
      %p111 = scmp.ne.s32.totalorder %s96, %s110
      %p112 = scmp.eq.s32.totalorder %s23, 0
      %p113 = por %p111, %p112
      %s114 = ssub.s32 %s17, %s24
      %p115 = scmp.eq.s32.totalorder %s114, 0
      %s117 = sadd.s32 %s116, 1
      %s118 = scalar_select %p115, %s116, %s117
      %p121 = pneg %p115
      %p122 = scmp.eq.s32.totalorder %s17, 1
      %p123 = por %p121, %p122
      %p124 = scmp.ne.s32.totalorder %s116, %s119
      %p125 = scmp.eq.s32.totalorder %s17, 0
      %p126 = por %p124, %p125
      %p127 = scmp.ne.s32.totalorder %s116, %s119
      %p128 = scmp.eq.s32.totalorder %s22, 1
      %p129 = por %p127, %p128
      %p130 = scmp.ne.s32.totalorder %s119, %s120
      %p131 = scmp.eq.s32.totalorder %s22, 0
      %p132 = por %p130, %p131
      %p133 = scmp.ne.s32.totalorder %s119, %s120
      %p134 = scmp.eq.s32.totalorder %s23, 1
      %p135 = por %p133, %p134
      %p137 = scmp.ne.s32.totalorder %s120, %s136
      %p138 = scmp.eq.s32.totalorder %s23, 0
      %p139 = por %p137, %p138
      %p140 = scmp.le.s32.totalorder 1, %s17
      %p141 = scmp.lt.s32.totalorder %s17, 3
      %p142 = pnand %p140, %p141
      %p143 = pneg %p142
      // Predicated region
      $region9: #{tpu_custom_call.1} parent=5 // pred_check
        _
      $region10: #{tpu_custom_call.1} parent=5 // pred_check_branch
        %145 = sbr.rel (%p142) target = $region12
      $region11: #{tpu_custom_call.1} parent=5 // pred_region
        %s146 = ssub.s32 %s17, 1
        // Predicated region
        $region13: #{tpu_custom_call.1} parent=11 // pred_check
          %p147 = pneg %p64
        $region14: #{tpu_custom_call.1} parent=11 // pred_check_branch
          %149 = sbr.rel (%p147) target = $region16
        $region15: #{tpu_custom_call.1} parent=11 // pred_region
          %s151 = ssub.s32 256, 256
          %152 = vsyncadd [#allocation6], %s151
          %s153 = sshll.u32 [#allocation5], 4
          %s154 = int_to_ptr.vmem [resolvable:$true] %s153
          %159 = dma.hbm_to_vmem [thread:$0]  %s1, 256, %s154, [#allocation6], 128, 128, 8
        $region16: #{tpu_custom_call.1} parent=11 // pred_fallthru
          _
        // Predicated region
        $region17: #{tpu_custom_call.1} parent=11 // pred_check
          %p160 = pneg %p85
        $region18: #{tpu_custom_call.1} parent=11 // pred_check_branch
          %162 = sbr.rel (%p160) target = $region20
        $region19: #{tpu_custom_call.1} parent=11 // pred_region
          %s164 = ssub.s32 3072, 3072
          %165 = vsyncadd [#allocation6], %s164
          %s166 = sshll.u32 [#allocation7], 4
          %s167 = int_to_ptr.vmem [resolvable:$true] %s166
          %172 = dma.hbm_to_vmem [thread:$0]  %s2, 3072, %s167, [#allocation6], 128, 128, 8
        $region20: #{tpu_custom_call.1} parent=11 // pred_fallthru
          _
        // Predicated region
        $region21: #{tpu_custom_call.1} parent=11 // pred_check
          %p173 = pneg %p106
        $region22: #{tpu_custom_call.1} parent=11 // pred_check_branch
          %175 = sbr.rel (%p173) target = $region24
        $region23: #{tpu_custom_call.1} parent=11 // pred_region
          _
        $region24: #{tpu_custom_call.1} parent=11 // pred_fallthru
          _
      $region12: #{tpu_custom_call.1} parent=5 // pred_fallthru
        _
      %p176 = scmp.lt.s32.totalorder %s17, 2
      // Predicated region
      $region25: #{tpu_custom_call.1} parent=5 // pred_check
        %p177 = pneg %p176
      $region26: #{tpu_custom_call.1} parent=5 // pred_check_branch
        %179 = sbr.rel (%p177) target = $region28
      $region27: #{tpu_custom_call.1} parent=5 // pred_region
        // Predicated region
        $region29: #{tpu_custom_call.1} parent=27 // pred_check
          %p180 = pneg %p37
        $region30: #{tpu_custom_call.1} parent=27 // pred_check_branch
          %182 = sbr.rel (%p180) target = $region32
        $region31: #{tpu_custom_call.1} parent=27 // pred_region
          %s183 = sand.u32 %s27, 1
          %s184 = scalar_lea.sflag [#allocation3], %s183
          %s185 = sand.u32 %s27, 1
          %s186 = smul.addr %s185, 64
          %s187 = scalar_lea.vmem [#allocation2], %s186
          %s188 = smul.u32 4, %s17
          %s190 = ssub.s32 1024, 1024
          %191 = vsyncadd %s184, %s190
          %s192 = smul.addr %s188, 2
          %s193 = smul.addr %s192, 128
          %s194 = scalar_lea.hbm %s0, %s193
          %s195 = sshll.u32 %s187, 4
          %s196 = int_to_ptr.vmem [resolvable:$true] %s195
          %201 = dma.hbm_to_vmem [thread:$0]  %s194, 1024, %s196, %s184, 128, 128, 8
        $region32: #{tpu_custom_call.1} parent=27 // pred_fallthru
          _
      $region28: #{tpu_custom_call.1} parent=5 // pred_fallthru
        _
      %p202 = scmp.le.s32.totalorder 1, %s17
      %p203 = scmp.lt.s32.totalorder %s17, 3
      %p204 = pnand %p202, %p203
      %p205 = pneg %p204
      // Predicated region
      $region33: #{tpu_custom_call.1} parent=5 // pred_check
        _
      $region34: #{tpu_custom_call.1} parent=5 // pred_check_branch
        %207 = sbr.rel (%p204) target = $region36
      $region35: #{tpu_custom_call.1} parent=5 // pred_region
        %s208 = ssub.s32 %s17, 1
        %s209 = sand.u32 %s30, 1
        %s210 = scalar_lea.sflag [#allocation3], %s209
        %s211 = sand.u32 %s30, 1
        %s212 = smul.addr %s211, 64
        %s213 = scalar_lea.vmem [#allocation2], %s212
        // Predicated region
        $region37: #{tpu_custom_call.1} parent=35 // pred_check
          %p214 = pneg %p43
        $region38: #{tpu_custom_call.1} parent=35 // pred_check_branch
          %216 = sbr.rel (%p214) target = $region40
        $region39: #{tpu_custom_call.1} parent=35 // pred_region
          %217 = dma.done %s210, 1024
        $region40: #{tpu_custom_call.1} parent=35 // pred_fallthru
          _
        // Predicated region
        $region41: #{tpu_custom_call.1} parent=35 // pred_check
          %p218 = pneg %p64
        $region42: #{tpu_custom_call.1} parent=35 // pred_check_branch
          %220 = sbr.rel (%p218) target = $region44
        $region43: #{tpu_custom_call.1} parent=35 // pred_region
          %221 = dma.done [#allocation6], 256
        $region44: #{tpu_custom_call.1} parent=35 // pred_fallthru
          _
        // Predicated region
        $region45: #{tpu_custom_call.1} parent=35 // pred_check
          %p222 = pneg %p85
        $region46: #{tpu_custom_call.1} parent=35 // pred_check_branch
          %224 = sbr.rel (%p222) target = $region48
        $region47: #{tpu_custom_call.1} parent=35 // pred_region
          %225 = dma.done [#allocation6], 3072
        $region48: #{tpu_custom_call.1} parent=35 // pred_fallthru
          _
        %s226 = sand.u32 %s30, 1
        %s227 = scalar_lea.sflag [#allocation3], %s226
        %s228 = sand.u32 %s30, 1
        %s229 = smul.addr %s228, 64
        %s230 = scalar_lea.vmem [#allocation2], %s229
        %p231 = pneg %p43
        %p232 = pneg %p40
        %p233 = pneg %p64
        %p234 = pneg %p61
        %p235 = pneg %p85
        %p236 = pneg %p82
        %p237 = pneg %p106
        %p238 = pneg %p103
        %p239 = pneg %p132
        %p240 = pneg %p129
        %s241 = sand.u32 %s119, 1
        %s242 = scalar_lea.sflag [#allocation4], %s241
        %s243 = sand.u32 %s119, 1
        %s244 = smul.addr %s243, 64
        %s245 = scalar_lea.vmem [#allocation8], %s244
        %s246 = smul.u32 4, %s22
        %s247 = smul.u32 4, %s22
        %v248 = vld [vmem:[%s213] sm:$0xff]
        %v249 = vld [vmem:[%s213 + $0x8] sm:$0xff]
        %v250 = vld [vmem:[%s213 + $0x10] sm:$0xff]
        %v251 = vld [vmem:[%s213 + $0x18] sm:$0xff]
        %v252 = vld [vmem:[%s213 + $0x20] sm:$0xff]
        %v253 = vld [vmem:[%s213 + $0x28] sm:$0xff]
        %v254 = vld [vmem:[%s213 + $0x30] sm:$0xff]
        %v255 = vld [vmem:[%s213 + $0x38] sm:$0xff]
        %v256 = vld [vmem:[#allocation5] sm:$0xff]
        %v257 = vld [vmem:[#allocation5 + $0x8] sm:$0xff]
        %v258 = vadd.f32 %v248, %v256
        %v259 = vadd.f32 %v249, %v257
        %v260 = vadd.f32 %v250, %v256
        %v261 = vadd.f32 %v251, %v257
        %v262 = vadd.f32 %v252, %v256
        %v263 = vadd.f32 %v253, %v257
        %v264 = vadd.f32 %v254, %v256
        %v265 = vadd.f32 %v255, %v257
        %v266 = vld [vmem:[#allocation7] sm:$0xff]
        %v267 = vld [vmem:[#allocation7 + $0x8] sm:$0xff]
        %v268 = vld [vmem:[#allocation7 + $0x10] sm:$0xff]
        %v269 = vld [vmem:[#allocation7 + $0x18] sm:$0xff]
        %v270 = vld [vmem:[%s3] sm:$0x1]
        %v272 = vlaneseq
        %v273 = vshrl.u32 %v272, 7
        %v274 = vsub.s32 0, %v273
        %v275 = vrot.slane %v270, %v274
        %vm277 = vcmask 261120
        %v279 = vsel %vm277, %v258, 0
        %v282 = vsel %vm277, %v259, 0
        %v285 = vsel %vm277, %v260, 0
        %v288 = vsel %vm277, %v261, 0
        %v291 = vsel %vm277, %v262, 0
        %v294 = vsel %vm277, %v263, 0
        %v297 = vsel %vm277, %v264, 0
        %v300 = vsel %vm277, %v265, 0
        %302 = vmatprep.subr.mxu0 0.0
        %303 = vmatpush1.msra.mxu0 %v266
        %304 = vmatprep.subr.mxu0 0.0
        %305 = vmatpush1.msra.mxu0 %v267
        %306 = vmatprep.subr.mxu0 0.0
        %307 = vmatpush1.msra.mxu0 %v268
        %308 = vmatprep.subr.mxu0 0.0
        %309 = vmatpush1.msra.mxu0 %v269
        %310 = vmatprep.subr.mxu0 0.0
        %311 = vmatpush1.msra.mxu0 0.0
        %312 = vmatprep.subr.mxu0 0.0
        %313 = vmatpush1.msra.mxu0 0.0
        %314 = vmatprep.subr.mxu0 0.0
        %315 = vmatpush1.msra.mxu0 0.0
        %316 = vmatprep.subr.mxu0 0.0
        %317 = vmatpush1.msra.mxu0 0.0
        %318 = vmatprep.subr.mxu0 0.0
        %319 = vmatpush1.msra.mxu0 0.0
        %320 = vmatprep.subr.mxu0 0.0
        %321 = vmatpush1.msra.mxu0 0.0
        %322 = vmatprep.subr.mxu0 0.0
        %323 = vmatpush1.msra.mxu0 0.0
        %324 = vmatprep.subr.mxu0 0.0
        %325 = vmatpush1.msra.mxu0 0.0
        %326 = vmatprep.subr.mxu0 0.0
        %327 = vmatpush1.msra.mxu0 0.0
        %328 = vmatprep.subr.mxu0 0.0
        %329 = vmatpush1.msra.mxu0 0.0
        %330 = vmatprep.subr.mxu0 0.0
        %331 = vmatpush1.msra.mxu0 0.0
        %332 = vmatprep.subr.mxu0 0.0
        %333 = vmatpush1.msra.mxu0 0.0
        %334 = vmatprep.subr.mxu0 0.0
        %335 = vmatpush1.msra.mxu0 0.0
        %336 = vmatprep.subr.mxu0 0.0
        %337 = vmatpush1.msra.mxu0 0.0
        %338 = vmatprep.subr.mxu0 0.0
        %339 = vmatpush1.msra.mxu0 0.0
        %340 = vmatprep.subr.mxu0 0.0
        %341 = vmatpush1.msra.mxu0 0.0
        %342 = vmatprep.subr.mxu0 0.0
        %343 = vmatpush1.msra.mxu0 0.0
        %344 = vmatprep.subr.mxu0 0.0
        %345 = vmatpush1.msra.mxu0 0.0
        %346 = vmatprep.subr.mxu0 0.0
        %347 = vmatpush1.msra.mxu0 0.0
        %348 = vmatprep.subr.mxu0 0.0
        %349 = vmatpush1.msra.mxu0 0.0
        %350 = vmatprep.subr.mxu0 0.0
        %351 = vmatpush1.msra.mxu0 0.0
        %352 = vmatprep.subr.mxu0 0.0
        %353 = vmatpush1.msra.mxu0 0.0
        %354 = vmatprep.subr.mxu0 0.0
        %355 = vmatpush1.msra.mxu0 0.0
        %356 = vmatprep.subr.mxu0 0.0
        %357 = vmatpush1.msra.mxu0 0.0
        %358 = vmatprep.subr.mxu0 0.0
        %359 = vmatpush1.msra.mxu0 0.0
        %360 = vmatprep.subr.mxu0 0.0
        %361 = vmatpush1.msra.mxu0 0.0
        %362 = vmatprep.subr.mxu0 0.0
        %363 = vmatpush1.msra.mxu0 0.0
        %364 = vmatprep.subr.mxu0 0.0
        %365 = vmatpush1.msra.mxu0 0.0
        %366 = vmatprep.mubr.f32.mxu0 0.0
        %367 = vmatmul.mubr.f32.gmra.mrb[0].mxu0 %v279
        %v368 = vpop.f32.mrb[0].mxu0
        %v369 = vadd.f32 %v275, %v368
        %v370 = vpop.f32.mrb[0].mxu0
        %371 = vmatprep.mubr.f32.mxu0 0.0
        %372 = vmatmul.mubr.f32.gmra.mrb[0].mxu0 %v282
        %v373 = vpop.f32.mrb[0].mxu0
        %v374 = vadd.f32 %v275, %v373
        %v375 = vpop.f32.mrb[0].mxu0
        %376 = vmatprep.mubr.f32.mxu0 0.0
        %377 = vmatmul.mubr.f32.gmra.mrb[0].mxu0 %v285
        %v378 = vpop.f32.mrb[0].mxu0
        %v379 = vadd.f32 %v275, %v378
        %v380 = vpop.f32.mrb[0].mxu0
        %381 = vmatprep.mubr.f32.mxu0 0.0
        %382 = vmatmul.mubr.f32.gmra.mrb[0].mxu0 %v288
        %v383 = vpop.f32.mrb[0].mxu0
        %v384 = vadd.f32 %v275, %v383
        %v385 = vpop.f32.mrb[0].mxu0
        %386 = vmatprep.mubr.f32.mxu0 0.0
        %387 = vmatmul.mubr.f32.gmra.mrb[0].mxu0 %v291
        %v388 = vpop.f32.mrb[0].mxu0
        %v389 = vadd.f32 %v275, %v388
        %v390 = vpop.f32.mrb[0].mxu0
        %391 = vmatprep.mubr.f32.mxu0 0.0
        %392 = vmatmul.mubr.f32.gmra.mrb[0].mxu0 %v294
        %v393 = vpop.f32.mrb[0].mxu0
        %v394 = vadd.f32 %v275, %v393
        %v395 = vpop.f32.mrb[0].mxu0
        %396 = vmatprep.mubr.f32.mxu0 0.0
        %397 = vmatmul.mubr.f32.gmra.mrb[0].mxu0 %v297
        %v398 = vpop.f32.mrb[0].mxu0
        %v399 = vadd.f32 %v275, %v398
        %v400 = vpop.f32.mrb[0].mxu0
        %401 = vmatprep.mubr.f32.mxu0 0.0
        %402 = vmatmul.mubr.f32.gmra.mrb[0].mxu0 %v300
        %v403 = vpop.f32.mrb[0].mxu0
        %v404 = vadd.f32 %v275, %v403
        %v405 = vpop.f32.mrb[0].mxu0
        %406 = vdwg.mxu0
        %s407 = scalar_lea.vmem [#allocation7], 32
        %v408 = vld [vmem:[%s407] sm:$0xff]
        %v409 = vld [vmem:[%s407 + $0x8] sm:$0xff]
        %v410 = vld [vmem:[%s407 + $0x10] sm:$0xff]
        %v411 = vld [vmem:[%s407 + $0x18] sm:$0xff]
        %s412 = scalar_lea.vmem %s3, 1
        %v413 = vld [vmem:[%s412] sm:$0x1]
        %v415 = vlaneseq
        %v416 = vshrl.u32 %v415, 7
        %v417 = vsub.s32 0, %v416
        %v418 = vrot.slane %v413, %v417
        %420 = vmatprep.subr.mxu0 0.0
        %421 = vmatpush1.msra.mxu0 %v408
        %422 = vmatprep.subr.mxu0 0.0
        %423 = vmatpush1.msra.mxu0 %v409
        %424 = vmatprep.subr.mxu0 0.0
        %425 = vmatpush1.msra.mxu0 %v410
        %426 = vmatprep.subr.mxu0 0.0
        %427 = vmatpush1.msra.mxu0 %v411
        %428 = vmatprep.subr.mxu0 0.0
        %429 = vmatpush1.msra.mxu0 0.0
        %430 = vmatprep.subr.mxu0 0.0
        %431 = vmatpush1.msra.mxu0 0.0
        %432 = vmatprep.subr.mxu0 0.0
        %433 = vmatpush1.msra.mxu0 0.0
        %434 = vmatprep.subr.mxu0 0.0
        %435 = vmatpush1.msra.mxu0 0.0
        %436 = vmatprep.subr.mxu0 0.0
        %437 = vmatpush1.msra.mxu0 0.0
        %438 = vmatprep.subr.mxu0 0.0
        %439 = vmatpush1.msra.mxu0 0.0
        %440 = vmatprep.subr.mxu0 0.0
        %441 = vmatpush1.msra.mxu0 0.0
        %442 = vmatprep.subr.mxu0 0.0
        %443 = vmatpush1.msra.mxu0 0.0
        %444 = vmatprep.subr.mxu0 0.0
        %445 = vmatpush1.msra.mxu0 0.0
        %446 = vmatprep.subr.mxu0 0.0
        %447 = vmatpush1.msra.mxu0 0.0
        %448 = vmatprep.subr.mxu0 0.0
        %449 = vmatpush1.msra.mxu0 0.0
        %450 = vmatprep.subr.mxu0 0.0
        %451 = vmatpush1.msra.mxu0 0.0
        %452 = vmatprep.subr.mxu0 0.0
        %453 = vmatpush1.msra.mxu0 0.0
        %454 = vmatprep.subr.mxu0 0.0
        %455 = vmatpush1.msra.mxu0 0.0
        %456 = vmatprep.subr.mxu0 0.0
        %457 = vmatpush1.msra.mxu0 0.0
        %458 = vmatprep.subr.mxu0 0.0
        %459 = vmatpush1.msra.mxu0 0.0
        %460 = vmatprep.subr.mxu0 0.0
        %461 = vmatpush1.msra.mxu0 0.0
        %462 = vmatprep.subr.mxu0 0.0
        %463 = vmatpush1.msra.mxu0 0.0
        %464 = vmatprep.subr.mxu0 0.0
        %465 = vmatpush1.msra.mxu0 0.0
        %466 = vmatprep.subr.mxu0 0.0
        %467 = vmatpush1.msra.mxu0 0.0
        %468 = vmatprep.subr.mxu0 0.0
        %469 = vmatpush1.msra.mxu0 0.0
        %470 = vmatprep.subr.mxu0 0.0
        %471 = vmatpush1.msra.mxu0 0.0
        %472 = vmatprep.subr.mxu0 0.0
        %473 = vmatpush1.msra.mxu0 0.0
        %474 = vmatprep.subr.mxu0 0.0
        %475 = vmatpush1.msra.mxu0 0.0
        %476 = vmatprep.subr.mxu0 0.0
        %477 = vmatpush1.msra.mxu0 0.0
        %478 = vmatprep.subr.mxu0 0.0
        %479 = vmatpush1.msra.mxu0 0.0
        %480 = vmatprep.subr.mxu0 0.0
        %481 = vmatpush1.msra.mxu0 0.0
        %482 = vmatprep.subr.mxu0 0.0
        %483 = vmatpush1.msra.mxu0 0.0
        %484 = vmatprep.mubr.f32.mxu0 0.0
        %485 = vmatmul.mubr.f32.gmra.mrb[0].mxu0 %v279
        %v486 = vpop.f32.mrb[0].mxu0
        %v487 = vadd.f32 %v418, %v486
        %v488 = vpop.f32.mrb[0].mxu0
        %489 = vmatprep.mubr.f32.mxu0 0.0
        %490 = vmatmul.mubr.f32.gmra.mrb[0].mxu0 %v282
        %v491 = vpop.f32.mrb[0].mxu0
        %v492 = vadd.f32 %v418, %v491
        %v493 = vpop.f32.mrb[0].mxu0
        %494 = vmatprep.mubr.f32.mxu0 0.0
        %495 = vmatmul.mubr.f32.gmra.mrb[0].mxu0 %v285
        %v496 = vpop.f32.mrb[0].mxu0
        %v497 = vadd.f32 %v418, %v496
        %v498 = vpop.f32.mrb[0].mxu0
        %499 = vmatprep.mubr.f32.mxu0 0.0
        %500 = vmatmul.mubr.f32.gmra.mrb[0].mxu0 %v288
        %v501 = vpop.f32.mrb[0].mxu0
        %v502 = vadd.f32 %v418, %v501
        %v503 = vpop.f32.mrb[0].mxu0
        %504 = vmatprep.mubr.f32.mxu0 0.0
        %505 = vmatmul.mubr.f32.gmra.mrb[0].mxu0 %v291
        %v506 = vpop.f32.mrb[0].mxu0
        %v507 = vadd.f32 %v418, %v506
        %v508 = vpop.f32.mrb[0].mxu0
        %509 = vmatprep.mubr.f32.mxu0 0.0
        %510 = vmatmul.mubr.f32.gmra.mrb[0].mxu0 %v294
        %v511 = vpop.f32.mrb[0].mxu0
        %v512 = vadd.f32 %v418, %v511
        %v513 = vpop.f32.mrb[0].mxu0
        %514 = vmatprep.mubr.f32.mxu0 0.0
        %515 = vmatmul.mubr.f32.gmra.mrb[0].mxu0 %v297
        %v516 = vpop.f32.mrb[0].mxu0
        %v517 = vadd.f32 %v418, %v516
        %v518 = vpop.f32.mrb[0].mxu0
        %519 = vmatprep.mubr.f32.mxu0 0.0
        %520 = vmatmul.mubr.f32.gmra.mrb[0].mxu0 %v300
        %v521 = vpop.f32.mrb[0].mxu0
        %v522 = vadd.f32 %v418, %v521
        %v523 = vpop.f32.mrb[0].mxu0
        %524 = vdwg.mxu0
        %s525 = scalar_lea.vmem [#allocation7], 64
        %v526 = vld [vmem:[%s525] sm:$0xff]
        %v527 = vld [vmem:[%s525 + $0x8] sm:$0xff]
        %v528 = vld [vmem:[%s525 + $0x10] sm:$0xff]
        %v529 = vld [vmem:[%s525 + $0x18] sm:$0xff]
        %s530 = scalar_lea.vmem %s3, 2
        %v531 = vld [vmem:[%s530] sm:$0x1]
        %v533 = vlaneseq
        %v534 = vshrl.u32 %v533, 7
        %v535 = vsub.s32 0, %v534
        %v536 = vrot.slane %v531, %v535
        %538 = vmatprep.subr.mxu0 0.0
        %539 = vmatpush1.msra.mxu0 %v526
        %540 = vmatprep.subr.mxu0 0.0
        %541 = vmatpush1.msra.mxu0 %v527
        %542 = vmatprep.subr.mxu0 0.0
        %543 = vmatpush1.msra.mxu0 %v528
        %544 = vmatprep.subr.mxu0 0.0
        %545 = vmatpush1.msra.mxu0 %v529
        %546 = vmatprep.subr.mxu0 0.0
        %547 = vmatpush1.msra.mxu0 0.0
        %548 = vmatprep.subr.mxu0 0.0
        %549 = vmatpush1.msra.mxu0 0.0
        %550 = vmatprep.subr.mxu0 0.0
        %551 = vmatpush1.msra.mxu0 0.0
        %552 = vmatprep.subr.mxu0 0.0
        %553 = vmatpush1.msra.mxu0 0.0
        %554 = vmatprep.subr.mxu0 0.0
        %555 = vmatpush1.msra.mxu0 0.0
        %556 = vmatprep.subr.mxu0 0.0
        %557 = vmatpush1.msra.mxu0 0.0
        %558 = vmatprep.subr.mxu0 0.0
        %559 = vmatpush1.msra.mxu0 0.0
        %560 = vmatprep.subr.mxu0 0.0
        %561 = vmatpush1.msra.mxu0 0.0
        %562 = vmatprep.subr.mxu0 0.0
        %563 = vmatpush1.msra.mxu0 0.0
        %564 = vmatprep.subr.mxu0 0.0
        %565 = vmatpush1.msra.mxu0 0.0
        %566 = vmatprep.subr.mxu0 0.0
        %567 = vmatpush1.msra.mxu0 0.0
        %568 = vmatprep.subr.mxu0 0.0
        %569 = vmatpush1.msra.mxu0 0.0
        %570 = vmatprep.subr.mxu0 0.0
        %571 = vmatpush1.msra.mxu0 0.0
        %572 = vmatprep.subr.mxu0 0.0
        %573 = vmatpush1.msra.mxu0 0.0
        %574 = vmatprep.subr.mxu0 0.0
        %575 = vmatpush1.msra.mxu0 0.0
        %576 = vmatprep.subr.mxu0 0.0
        %577 = vmatpush1.msra.mxu0 0.0
        %578 = vmatprep.subr.mxu0 0.0
        %579 = vmatpush1.msra.mxu0 0.0
        %580 = vmatprep.subr.mxu0 0.0
        %581 = vmatpush1.msra.mxu0 0.0
        %582 = vmatprep.subr.mxu0 0.0
        %583 = vmatpush1.msra.mxu0 0.0
        %584 = vmatprep.subr.mxu0 0.0
        %585 = vmatpush1.msra.mxu0 0.0
        %586 = vmatprep.subr.mxu0 0.0
        %587 = vmatpush1.msra.mxu0 0.0
        %588 = vmatprep.subr.mxu0 0.0
        %589 = vmatpush1.msra.mxu0 0.0
        %590 = vmatprep.subr.mxu0 0.0
        %591 = vmatpush1.msra.mxu0 0.0
        %592 = vmatprep.subr.mxu0 0.0
        %593 = vmatpush1.msra.mxu0 0.0
        %594 = vmatprep.subr.mxu0 0.0
        %595 = vmatpush1.msra.mxu0 0.0
        %596 = vmatprep.subr.mxu0 0.0
        %597 = vmatpush1.msra.mxu0 0.0
        %598 = vmatprep.subr.mxu0 0.0
        %599 = vmatpush1.msra.mxu0 0.0
        %600 = vmatprep.subr.mxu0 0.0
        %601 = vmatpush1.msra.mxu0 0.0
        %602 = vmatprep.mubr.f32.mxu0 0.0
        %603 = vmatmul.mubr.f32.gmra.mrb[0].mxu0 %v279
        %v604 = vpop.f32.mrb[0].mxu0
        %v605 = vadd.f32 %v536, %v604
        %v606 = vpop.f32.mrb[0].mxu0
        %607 = vmatprep.mubr.f32.mxu0 0.0
        %608 = vmatmul.mubr.f32.gmra.mrb[0].mxu0 %v282
        %v609 = vpop.f32.mrb[0].mxu0
        %v610 = vadd.f32 %v536, %v609
        %v611 = vpop.f32.mrb[0].mxu0
        %612 = vmatprep.mubr.f32.mxu0 0.0
        %613 = vmatmul.mubr.f32.gmra.mrb[0].mxu0 %v285
        %v614 = vpop.f32.mrb[0].mxu0
        %v615 = vadd.f32 %v536, %v614
        %v616 = vpop.f32.mrb[0].mxu0
        %617 = vmatprep.mubr.f32.mxu0 0.0
        %618 = vmatmul.mubr.f32.gmra.mrb[0].mxu0 %v288
        %v619 = vpop.f32.mrb[0].mxu0
        %v620 = vadd.f32 %v536, %v619
        %v621 = vpop.f32.mrb[0].mxu0
        %622 = vmatprep.mubr.f32.mxu0 0.0
        %623 = vmatmul.mubr.f32.gmra.mrb[0].mxu0 %v291
        %v624 = vpop.f32.mrb[0].mxu0
        %v625 = vadd.f32 %v536, %v624
        %v626 = vpop.f32.mrb[0].mxu0
        %627 = vmatprep.mubr.f32.mxu0 0.0
        %628 = vmatmul.mubr.f32.gmra.mrb[0].mxu0 %v294
        %v629 = vpop.f32.mrb[0].mxu0
        %v630 = vadd.f32 %v536, %v629
        %v631 = vpop.f32.mrb[0].mxu0
        %632 = vmatprep.mubr.f32.mxu0 0.0
        %633 = vmatmul.mubr.f32.gmra.mrb[0].mxu0 %v297
        %v634 = vpop.f32.mrb[0].mxu0
        %v635 = vadd.f32 %v536, %v634
        %v636 = vpop.f32.mrb[0].mxu0
        %637 = vmatprep.mubr.f32.mxu0 0.0
        %638 = vmatmul.mubr.f32.gmra.mrb[0].mxu0 %v300
        %v639 = vpop.f32.mrb[0].mxu0
        %v640 = vadd.f32 %v536, %v639
        %v641 = vpop.f32.mrb[0].mxu0
        %642 = vdwg.mxu0
        %v644 = vsel %vm277, %v369, 0
        %v647 = vsel %vm277, %v374, 0
        %v650 = vsel %vm277, %v487, 0
        %v653 = vsel %vm277, %v492, 0
        %655 = vmatprep.subr.mxu0 0.0
        %656 = vmatpush1.xpose.msra.mxu0 %v650
        %657 = vmatprep.subr.mxu0 0.0
        %658 = vmatpush1.xpose.msra.mxu0 %v653
        %659 = vmatprep.subr.mxu0 0.0
        %660 = vmatpush1.xpose.msra.mxu0 0.0
        %661 = vmatprep.subr.mxu0 0.0
        %662 = vmatpush1.xpose.msra.mxu0 0.0
        %663 = vmatprep.subr.mxu0 0.0
        %664 = vmatpush1.xpose.msra.mxu0 0.0
        %665 = vmatprep.subr.mxu0 0.0
        %666 = vmatpush1.xpose.msra.mxu0 0.0
        %667 = vmatprep.subr.mxu0 0.0
        %668 = vmatpush1.xpose.msra.mxu0 0.0
        %669 = vmatprep.subr.mxu0 0.0
        %670 = vmatpush1.xpose.msra.mxu0 0.0
        %671 = vmatprep.subr.mxu0 0.0
        %672 = vmatpush1.xpose.msra.mxu0 0.0
        %673 = vmatprep.subr.mxu0 0.0
        %674 = vmatpush1.xpose.msra.mxu0 0.0
        %675 = vmatprep.subr.mxu0 0.0
        %676 = vmatpush1.xpose.msra.mxu0 0.0
        %677 = vmatprep.subr.mxu0 0.0
        %678 = vmatpush1.xpose.msra.mxu0 0.0
        %679 = vmatprep.subr.mxu0 0.0
        %680 = vmatpush1.xpose.msra.mxu0 0.0
        %681 = vmatprep.subr.mxu0 0.0
        %682 = vmatpush1.xpose.msra.mxu0 0.0
        %683 = vmatprep.subr.mxu0 0.0
        %684 = vmatpush1.xpose.msra.mxu0 0.0
        %685 = vmatprep.subr.mxu0 0.0
        %686 = vmatpush1.xpose.msra.mxu0 0.0
        %687 = vmatprep.subr.mxu0 0.0
        %688 = vmatpush1.xpose.msra.mxu0 0.0
        %689 = vmatprep.subr.mxu0 0.0
        %690 = vmatpush1.xpose.msra.mxu0 0.0
        %691 = vmatprep.subr.mxu0 0.0
        %692 = vmatpush1.xpose.msra.mxu0 0.0
        %693 = vmatprep.subr.mxu0 0.0
        %694 = vmatpush1.xpose.msra.mxu0 0.0
        %695 = vmatprep.subr.mxu0 0.0
        %696 = vmatpush1.xpose.msra.mxu0 0.0
        %697 = vmatprep.subr.mxu0 0.0
        %698 = vmatpush1.xpose.msra.mxu0 0.0
        %699 = vmatprep.subr.mxu0 0.0
        %700 = vmatpush1.xpose.msra.mxu0 0.0
        %701 = vmatprep.subr.mxu0 0.0
        %702 = vmatpush1.xpose.msra.mxu0 0.0
        %703 = vmatprep.subr.mxu0 0.0
        %704 = vmatpush1.xpose.msra.mxu0 0.0
        %705 = vmatprep.subr.mxu0 0.0
        %706 = vmatpush1.xpose.msra.mxu0 0.0
        %707 = vmatprep.subr.mxu0 0.0
        %708 = vmatpush1.xpose.msra.mxu0 0.0
        %709 = vmatprep.subr.mxu0 0.0
        %710 = vmatpush1.xpose.msra.mxu0 0.0
        %711 = vmatprep.subr.mxu0 0.0
        %712 = vmatpush1.xpose.msra.mxu0 0.0
        %713 = vmatprep.subr.mxu0 0.0
        %714 = vmatpush1.xpose.msra.mxu0 0.0
        %715 = vmatprep.subr.mxu0 0.0
        %716 = vmatpush1.xpose.msra.mxu0 0.0
        %717 = vmatprep.subr.mxu0 0.0
        %718 = vmatpush1.xpose.msra.mxu0 0.0
        %719 = vmatprep.mubr.f32.mxu0 0.0
        %720 = vmatmul.mubr.f32.gmra.mrb[0].mxu0 %v644
        %v721 = vpop.f32.mrb[0].mxu0
        %v722 = vadd.f32 0.0, %v721
        %v723 = vpop.f32.mrb[0].mxu0
        %724 = vmatprep.mubr.f32.mxu0 0.0
        %725 = vmatmul.mubr.f32.gmra.mrb[0].mxu0 %v647
        %v726 = vpop.f32.mrb[0].mxu0
        %v727 = vadd.f32 0.0, %v726
        %v728 = vpop.f32.mrb[0].mxu0
        %729 = vdwg.mxu0
        %v731 = vsel %vm277, %v379, 0
        %v734 = vsel %vm277, %v384, 0
        %v737 = vsel %vm277, %v497, 0
        %v740 = vsel %vm277, %v502, 0
        %742 = vmatprep.subr.mxu0 0.0
        %743 = vmatpush1.xpose.msra.mxu0 %v737
        %744 = vmatprep.subr.mxu0 0.0
        %745 = vmatpush1.xpose.msra.mxu0 %v740
        %746 = vmatprep.subr.mxu0 0.0
        %747 = vmatpush1.xpose.msra.mxu0 0.0
        %748 = vmatprep.subr.mxu0 0.0
        %749 = vmatpush1.xpose.msra.mxu0 0.0
        %750 = vmatprep.subr.mxu0 0.0
        %751 = vmatpush1.xpose.msra.mxu0 0.0
        %752 = vmatprep.subr.mxu0 0.0
        %753 = vmatpush1.xpose.msra.mxu0 0.0
        %754 = vmatprep.subr.mxu0 0.0
        %755 = vmatpush1.xpose.msra.mxu0 0.0
        %756 = vmatprep.subr.mxu0 0.0
        %757 = vmatpush1.xpose.msra.mxu0 0.0
        %758 = vmatprep.subr.mxu0 0.0
        %759 = vmatpush1.xpose.msra.mxu0 0.0
        %760 = vmatprep.subr.mxu0 0.0
        %761 = vmatpush1.xpose.msra.mxu0 0.0
        %762 = vmatprep.subr.mxu0 0.0
        %763 = vmatpush1.xpose.msra.mxu0 0.0
        %764 = vmatprep.subr.mxu0 0.0
        %765 = vmatpush1.xpose.msra.mxu0 0.0
        %766 = vmatprep.subr.mxu0 0.0
        %767 = vmatpush1.xpose.msra.mxu0 0.0
        %768 = vmatprep.subr.mxu0 0.0
        %769 = vmatpush1.xpose.msra.mxu0 0.0
        %770 = vmatprep.subr.mxu0 0.0
        %771 = vmatpush1.xpose.msra.mxu0 0.0
        %772 = vmatprep.subr.mxu0 0.0
        %773 = vmatpush1.xpose.msra.mxu0 0.0
        %774 = vmatprep.subr.mxu0 0.0
        %775 = vmatpush1.xpose.msra.mxu0 0.0
        %776 = vmatprep.subr.mxu0 0.0
        %777 = vmatpush1.xpose.msra.mxu0 0.0
        %778 = vmatprep.subr.mxu0 0.0
        %779 = vmatpush1.xpose.msra.mxu0 0.0
        %780 = vmatprep.subr.mxu0 0.0
        %781 = vmatpush1.xpose.msra.mxu0 0.0
        %782 = vmatprep.subr.mxu0 0.0
        %783 = vmatpush1.xpose.msra.mxu0 0.0
        %784 = vmatprep.subr.mxu0 0.0
        %785 = vmatpush1.xpose.msra.mxu0 0.0
        %786 = vmatprep.subr.mxu0 0.0
        %787 = vmatpush1.xpose.msra.mxu0 0.0
        %788 = vmatprep.subr.mxu0 0.0
        %789 = vmatpush1.xpose.msra.mxu0 0.0
        %790 = vmatprep.subr.mxu0 0.0
        %791 = vmatpush1.xpose.msra.mxu0 0.0
        %792 = vmatprep.subr.mxu0 0.0
        %793 = vmatpush1.xpose.msra.mxu0 0.0
        %794 = vmatprep.subr.mxu0 0.0
        %795 = vmatpush1.xpose.msra.mxu0 0.0
        %796 = vmatprep.subr.mxu0 0.0
        %797 = vmatpush1.xpose.msra.mxu0 0.0
        %798 = vmatprep.subr.mxu0 0.0
        %799 = vmatpush1.xpose.msra.mxu0 0.0
        %800 = vmatprep.subr.mxu0 0.0
        %801 = vmatpush1.xpose.msra.mxu0 0.0
        %802 = vmatprep.subr.mxu0 0.0
        %803 = vmatpush1.xpose.msra.mxu0 0.0
        %804 = vmatprep.subr.mxu0 0.0
        %805 = vmatpush1.xpose.msra.mxu0 0.0
        %806 = vmatprep.mubr.f32.mxu0 0.0
        %807 = vmatmul.mubr.f32.gmra.mrb[0].mxu0 %v731
        %v808 = vpop.f32.mrb[0].mxu0
        %v809 = vadd.f32 0.0, %v808
        %v810 = vpop.f32.mrb[0].mxu0
        %811 = vmatprep.mubr.f32.mxu0 0.0
        %812 = vmatmul.mubr.f32.gmra.mrb[0].mxu0 %v734
        %v813 = vpop.f32.mrb[0].mxu0
        %v814 = vadd.f32 0.0, %v813
        %v815 = vpop.f32.mrb[0].mxu0
        %816 = vdwg.mxu0
        %v818 = vsel %vm277, %v389, 0
        %v821 = vsel %vm277, %v394, 0
        %v824 = vsel %vm277, %v507, 0
        %v827 = vsel %vm277, %v512, 0
        %829 = vmatprep.subr.mxu0 0.0
        %830 = vmatpush1.xpose.msra.mxu0 %v824
        %831 = vmatprep.subr.mxu0 0.0
        %832 = vmatpush1.xpose.msra.mxu0 %v827
        %833 = vmatprep.subr.mxu0 0.0
        %834 = vmatpush1.xpose.msra.mxu0 0.0
        %835 = vmatprep.subr.mxu0 0.0
        %836 = vmatpush1.xpose.msra.mxu0 0.0
        %837 = vmatprep.subr.mxu0 0.0
        %838 = vmatpush1.xpose.msra.mxu0 0.0
        %839 = vmatprep.subr.mxu0 0.0
        %840 = vmatpush1.xpose.msra.mxu0 0.0
        %841 = vmatprep.subr.mxu0 0.0
        %842 = vmatpush1.xpose.msra.mxu0 0.0
        %843 = vmatprep.subr.mxu0 0.0
        %844 = vmatpush1.xpose.msra.mxu0 0.0
        %845 = vmatprep.subr.mxu0 0.0
        %846 = vmatpush1.xpose.msra.mxu0 0.0
        %847 = vmatprep.subr.mxu0 0.0
        %848 = vmatpush1.xpose.msra.mxu0 0.0
        %849 = vmatprep.subr.mxu0 0.0
        %850 = vmatpush1.xpose.msra.mxu0 0.0
        %851 = vmatprep.subr.mxu0 0.0
        %852 = vmatpush1.xpose.msra.mxu0 0.0
        %853 = vmatprep.subr.mxu0 0.0
        %854 = vmatpush1.xpose.msra.mxu0 0.0
        %855 = vmatprep.subr.mxu0 0.0
        %856 = vmatpush1.xpose.msra.mxu0 0.0
        %857 = vmatprep.subr.mxu0 0.0
        %858 = vmatpush1.xpose.msra.mxu0 0.0
        %859 = vmatprep.subr.mxu0 0.0
        %860 = vmatpush1.xpose.msra.mxu0 0.0
        %861 = vmatprep.subr.mxu0 0.0
        %862 = vmatpush1.xpose.msra.mxu0 0.0
        %863 = vmatprep.subr.mxu0 0.0
        %864 = vmatpush1.xpose.msra.mxu0 0.0
        %865 = vmatprep.subr.mxu0 0.0
        %866 = vmatpush1.xpose.msra.mxu0 0.0
        %867 = vmatprep.subr.mxu0 0.0
        %868 = vmatpush1.xpose.msra.mxu0 0.0
        %869 = vmatprep.subr.mxu0 0.0
        %870 = vmatpush1.xpose.msra.mxu0 0.0
        %871 = vmatprep.subr.mxu0 0.0
        %872 = vmatpush1.xpose.msra.mxu0 0.0
        %873 = vmatprep.subr.mxu0 0.0
        %874 = vmatpush1.xpose.msra.mxu0 0.0
        %875 = vmatprep.subr.mxu0 0.0
        %876 = vmatpush1.xpose.msra.mxu0 0.0
        %877 = vmatprep.subr.mxu0 0.0
        %878 = vmatpush1.xpose.msra.mxu0 0.0
        %879 = vmatprep.subr.mxu0 0.0
        %880 = vmatpush1.xpose.msra.mxu0 0.0
        %881 = vmatprep.subr.mxu0 0.0
        %882 = vmatpush1.xpose.msra.mxu0 0.0
        %883 = vmatprep.subr.mxu0 0.0
        %884 = vmatpush1.xpose.msra.mxu0 0.0
        %885 = vmatprep.subr.mxu0 0.0
        %886 = vmatpush1.xpose.msra.mxu0 0.0
        %887 = vmatprep.subr.mxu0 0.0
        %888 = vmatpush1.xpose.msra.mxu0 0.0
        %889 = vmatprep.subr.mxu0 0.0
        %890 = vmatpush1.xpose.msra.mxu0 0.0
        %891 = vmatprep.subr.mxu0 0.0
        %892 = vmatpush1.xpose.msra.mxu0 0.0
        %893 = vmatprep.mubr.f32.mxu0 0.0
        %894 = vmatmul.mubr.f32.gmra.mrb[0].mxu0 %v818
        %v895 = vpop.f32.mrb[0].mxu0
        %v896 = vadd.f32 0.0, %v895
        %v897 = vpop.f32.mrb[0].mxu0
        %898 = vmatprep.mubr.f32.mxu0 0.0
        %899 = vmatmul.mubr.f32.gmra.mrb[0].mxu0 %v821
        %v900 = vpop.f32.mrb[0].mxu0
        %v901 = vadd.f32 0.0, %v900
        %v902 = vpop.f32.mrb[0].mxu0
        %903 = vdwg.mxu0
        %v905 = vsel %vm277, %v399, 0
        %v908 = vsel %vm277, %v404, 0
        %v911 = vsel %vm277, %v517, 0
        %v914 = vsel %vm277, %v522, 0
        %916 = vmatprep.subr.mxu0 0.0
        %917 = vmatpush1.xpose.msra.mxu0 %v911
        %918 = vmatprep.subr.mxu0 0.0
        %919 = vmatpush1.xpose.msra.mxu0 %v914
        %920 = vmatprep.subr.mxu0 0.0
        %921 = vmatpush1.xpose.msra.mxu0 0.0
        %922 = vmatprep.subr.mxu0 0.0
        %923 = vmatpush1.xpose.msra.mxu0 0.0
        %924 = vmatprep.subr.mxu0 0.0
        %925 = vmatpush1.xpose.msra.mxu0 0.0
        %926 = vmatprep.subr.mxu0 0.0
        %927 = vmatpush1.xpose.msra.mxu0 0.0
        %928 = vmatprep.subr.mxu0 0.0
        %929 = vmatpush1.xpose.msra.mxu0 0.0
        %930 = vmatprep.subr.mxu0 0.0
        %931 = vmatpush1.xpose.msra.mxu0 0.0
        %932 = vmatprep.subr.mxu0 0.0
        %933 = vmatpush1.xpose.msra.mxu0 0.0
        %934 = vmatprep.subr.mxu0 0.0
        %935 = vmatpush1.xpose.msra.mxu0 0.0
        %936 = vmatprep.subr.mxu0 0.0
        %937 = vmatpush1.xpose.msra.mxu0 0.0
        %938 = vmatprep.subr.mxu0 0.0
        %939 = vmatpush1.xpose.msra.mxu0 0.0
        %940 = vmatprep.subr.mxu0 0.0
        %941 = vmatpush1.xpose.msra.mxu0 0.0
        %942 = vmatprep.subr.mxu0 0.0
        %943 = vmatpush1.xpose.msra.mxu0 0.0
        %944 = vmatprep.subr.mxu0 0.0
        %945 = vmatpush1.xpose.msra.mxu0 0.0
        %946 = vmatprep.subr.mxu0 0.0
        %947 = vmatpush1.xpose.msra.mxu0 0.0
        %948 = vmatprep.subr.mxu0 0.0
        %949 = vmatpush1.xpose.msra.mxu0 0.0
        %950 = vmatprep.subr.mxu0 0.0
        %951 = vmatpush1.xpose.msra.mxu0 0.0
        %952 = vmatprep.subr.mxu0 0.0
        %953 = vmatpush1.xpose.msra.mxu0 0.0
        %954 = vmatprep.subr.mxu0 0.0
        %955 = vmatpush1.xpose.msra.mxu0 0.0
        %956 = vmatprep.subr.mxu0 0.0
        %957 = vmatpush1.xpose.msra.mxu0 0.0
        %958 = vmatprep.subr.mxu0 0.0
        %959 = vmatpush1.xpose.msra.mxu0 0.0
        %960 = vmatprep.subr.mxu0 0.0
        %961 = vmatpush1.xpose.msra.mxu0 0.0
        %962 = vmatprep.subr.mxu0 0.0
        %963 = vmatpush1.xpose.msra.mxu0 0.0
        %964 = vmatprep.subr.mxu0 0.0
        %965 = vmatpush1.xpose.msra.mxu0 0.0
        %966 = vmatprep.subr.mxu0 0.0
        %967 = vmatpush1.xpose.msra.mxu0 0.0
        %968 = vmatprep.subr.mxu0 0.0
        %969 = vmatpush1.xpose.msra.mxu0 0.0
        %970 = vmatprep.subr.mxu0 0.0
        %971 = vmatpush1.xpose.msra.mxu0 0.0
        %972 = vmatprep.subr.mxu0 0.0
        %973 = vmatpush1.xpose.msra.mxu0 0.0
        %974 = vmatprep.subr.mxu0 0.0
        %975 = vmatpush1.xpose.msra.mxu0 0.0
        %976 = vmatprep.subr.mxu0 0.0
        %977 = vmatpush1.xpose.msra.mxu0 0.0
        %978 = vmatprep.subr.mxu0 0.0
        %979 = vmatpush1.xpose.msra.mxu0 0.0
        %980 = vmatprep.mubr.f32.mxu0 0.0
        %981 = vmatmul.mubr.f32.gmra.mrb[0].mxu0 %v905
        %v982 = vpop.f32.mrb[0].mxu0
        %v983 = vadd.f32 0.0, %v982
        %v984 = vpop.f32.mrb[0].mxu0
        %985 = vmatprep.mubr.f32.mxu0 0.0
        %986 = vmatmul.mubr.f32.gmra.mrb[0].mxu0 %v908
        %v987 = vpop.f32.mrb[0].mxu0
        %v988 = vadd.f32 0.0, %v987
        %v989 = vpop.f32.mrb[0].mxu0
        %990 = vdwg.mxu0
        %v991 = vmul.f32 %v722, 0.17677669
        %v992 = vmul.f32 %v727, 0.17677669
        %v993 = vmul.f32 %v809, 0.17677669
        %v994 = vmul.f32 %v814, 0.17677669
        %v995 = vmul.f32 %v896, 0.17677669
        %v996 = vmul.f32 %v901, 0.17677669
        %v997 = vmul.f32 %v983, 0.17677669
        %v998 = vmul.f32 %v988, 0.17677669
        %vm999 = vcmask 130048
        %v1000 = vsel %vm999, %v991, -inf
        %1001 = vmax.xlane.f32.xlu0 %v1000
        %v1002 = vpop.xlane.xlu0 %1001
        %v1003 = vsel %vm999, %v992, -inf
        %1004 = vmax.xlane.f32.xlu0 %v1003
        %v1005 = vpop.xlane.xlu0 %1004
        %v1006 = vsel %vm999, %v993, -inf
        %1007 = vmax.xlane.f32.xlu0 %v1006
        %v1008 = vpop.xlane.xlu0 %1007
        %v1009 = vsel %vm999, %v994, -inf
        %1010 = vmax.xlane.f32.xlu0 %v1009
        %v1011 = vpop.xlane.xlu0 %1010
        %v1012 = vsel %vm999, %v995, -inf
        %1013 = vmax.xlane.f32.xlu0 %v1012
        %v1014 = vpop.xlane.xlu0 %1013
        %v1015 = vsel %vm999, %v996, -inf
        %1016 = vmax.xlane.f32.xlu0 %v1015
        %v1017 = vpop.xlane.xlu0 %1016
        %v1018 = vsel %vm999, %v997, -inf
        %1019 = vmax.xlane.f32.xlu0 %v1018
        %v1020 = vpop.xlane.xlu0 %1019
        %v1021 = vsel %vm999, %v998, -inf
        %1022 = vmax.xlane.f32.xlu0 %v1021
        %v1023 = vpop.xlane.xlu0 %1022
        %v1024 = vsub.f32 %v991, %v1002
        %v1025 = vsub.f32 %v992, %v1005
        %v1026 = vsub.f32 %v993, %v1008
        %v1027 = vsub.f32 %v994, %v1011
        %v1028 = vsub.f32 %v995, %v1014
        %v1029 = vsub.f32 %v996, %v1017
        %v1030 = vsub.f32 %v997, %v1020
        %v1031 = vsub.f32 %v998, %v1023
        %v1032 = vmul.f32 %v1024, 1.442695
        %v1033 = vpow.pop %v1032
        %v1034 = vmul.f32 %v1025, 1.442695
        %v1035 = vpow.pop %v1034
        %v1036 = vmul.f32 %v1026, 1.442695
        %v1037 = vpow.pop %v1036
        %v1038 = vmul.f32 %v1027, 1.442695
        %v1039 = vpow.pop %v1038
        %v1040 = vmul.f32 %v1028, 1.442695
        %v1041 = vpow.pop %v1040
        %v1042 = vmul.f32 %v1029, 1.442695
        %v1043 = vpow.pop %v1042
        %v1044 = vmul.f32 %v1030, 1.442695
        %v1045 = vpow.pop %v1044
        %v1046 = vmul.f32 %v1031, 1.442695
        %v1047 = vpow.pop %v1046
        %v1048 = vsel %vm999, %v1033, 0.0
        %1049 = vadd.xlane.f32.xlu0 %v1048
        %v1050 = vpop.xlane.xlu0 %1049
        %v1051 = vsel %vm999, %v1035, 0.0
        %1052 = vadd.xlane.f32.xlu0 %v1051
        %v1053 = vpop.xlane.xlu0 %1052
        %v1054 = vsel %vm999, %v1037, 0.0
        %1055 = vadd.xlane.f32.xlu0 %v1054
        %v1056 = vpop.xlane.xlu0 %1055
        %v1057 = vsel %vm999, %v1039, 0.0
        %1058 = vadd.xlane.f32.xlu0 %v1057
        %v1059 = vpop.xlane.xlu0 %1058
        %v1060 = vsel %vm999, %v1041, 0.0
        %1061 = vadd.xlane.f32.xlu0 %v1060
        %v1062 = vpop.xlane.xlu0 %1061
        %v1063 = vsel %vm999, %v1043, 0.0
        %1064 = vadd.xlane.f32.xlu0 %v1063
        %v1065 = vpop.xlane.xlu0 %1064
        %v1066 = vsel %vm999, %v1045, 0.0
        %1067 = vadd.xlane.f32.xlu0 %v1066
        %v1068 = vpop.xlane.xlu0 %1067
        %v1069 = vsel %vm999, %v1047, 0.0
        %1070 = vadd.xlane.f32.xlu0 %v1069
        %v1071 = vpop.xlane.xlu0 %1070
        %v1072 = vrcp.pop %v1050
        %v1073 = vrcp.pop %v1053
        %v1074 = vrcp.pop %v1056
        %v1075 = vrcp.pop %v1059
        %v1076 = vrcp.pop %v1062
        %v1077 = vrcp.pop %v1065
        %v1078 = vrcp.pop %v1068
        %v1079 = vrcp.pop %v1071
        %v1080 = vmul.f32 %v1033, %v1072
        %v1081 = vmul.f32 %v1035, %v1073
        %v1082 = vmul.f32 %v1037, %v1074
        %v1083 = vmul.f32 %v1039, %v1075
        %v1084 = vmul.f32 %v1041, %v1076
        %v1085 = vmul.f32 %v1043, %v1077
        %v1086 = vmul.f32 %v1045, %v1078
        %v1087 = vmul.f32 %v1047, %v1079
        %v1089 = vsel %vm999, %v1080, 0
        %v1092 = vsel %vm999, %v1081, 0
        %1094 = vmatprep.subr.mxu0 0.0
        %1095 = vmatpush1.msra.mxu0 %v605
        %1096 = vmatprep.subr.mxu0 0.0
        %1097 = vmatpush1.msra.mxu0 %v610
        %1098 = vmatprep.subr.mxu0 0.0
        %1099 = vmatpush1.msra.mxu0 0.0
        %1100 = vmatprep.subr.mxu0 0.0
        %1101 = vmatpush1.msra.mxu0 0.0
        %1102 = vmatprep.subr.mxu0 0.0
        %1103 = vmatpush1.msra.mxu0 0.0
        %1104 = vmatprep.subr.mxu0 0.0
        %1105 = vmatpush1.msra.mxu0 0.0
        %1106 = vmatprep.subr.mxu0 0.0
        %1107 = vmatpush1.msra.mxu0 0.0
        %1108 = vmatprep.subr.mxu0 0.0
        %1109 = vmatpush1.msra.mxu0 0.0
        %1110 = vmatprep.subr.mxu0 0.0
        %1111 = vmatpush1.msra.mxu0 0.0
        %1112 = vmatprep.subr.mxu0 0.0
        %1113 = vmatpush1.msra.mxu0 0.0
        %1114 = vmatprep.subr.mxu0 0.0
        %1115 = vmatpush1.msra.mxu0 0.0
        %1116 = vmatprep.subr.mxu0 0.0
        %1117 = vmatpush1.msra.mxu0 0.0
        %1118 = vmatprep.subr.mxu0 0.0
        %1119 = vmatpush1.msra.mxu0 0.0
        %1120 = vmatprep.subr.mxu0 0.0
        %1121 = vmatpush1.msra.mxu0 0.0
        %1122 = vmatprep.subr.mxu0 0.0
        %1123 = vmatpush1.msra.mxu0 0.0
        %1124 = vmatprep.subr.mxu0 0.0
        %1125 = vmatpush1.msra.mxu0 0.0
        %1126 = vmatprep.subr.mxu0 0.0
        %1127 = vmatpush1.msra.mxu0 0.0
        %1128 = vmatprep.subr.mxu0 0.0
        %1129 = vmatpush1.msra.mxu0 0.0
        %1130 = vmatprep.subr.mxu0 0.0
        %1131 = vmatpush1.msra.mxu0 0.0
        %1132 = vmatprep.subr.mxu0 0.0
        %1133 = vmatpush1.msra.mxu0 0.0
        %1134 = vmatprep.subr.mxu0 0.0
        %1135 = vmatpush1.msra.mxu0 0.0
        %1136 = vmatprep.subr.mxu0 0.0
        %1137 = vmatpush1.msra.mxu0 0.0
        %1138 = vmatprep.subr.mxu0 0.0
        %1139 = vmatpush1.msra.mxu0 0.0
        %1140 = vmatprep.subr.mxu0 0.0
        %1141 = vmatpush1.msra.mxu0 0.0
        %1142 = vmatprep.subr.mxu0 0.0
        %1143 = vmatpush1.msra.mxu0 0.0
        %1144 = vmatprep.subr.mxu0 0.0
        %1145 = vmatpush1.msra.mxu0 0.0
        %1146 = vmatprep.subr.mxu0 0.0
        %1147 = vmatpush1.msra.mxu0 0.0
        %1148 = vmatprep.subr.mxu0 0.0
        %1149 = vmatpush1.msra.mxu0 0.0
        %1150 = vmatprep.subr.mxu0 0.0
        %1151 = vmatpush1.msra.mxu0 0.0
        %1152 = vmatprep.subr.mxu0 0.0
        %1153 = vmatpush1.msra.mxu0 0.0
        %1154 = vmatprep.subr.mxu0 0.0
        %1155 = vmatpush1.msra.mxu0 0.0
        %1156 = vmatprep.subr.mxu0 0.0
        %1157 = vmatpush1.msra.mxu0 0.0
        %1158 = vmatprep.mubr.f32.mxu0 0.0
        %1159 = vmatmul.mubr.f32.gmra.mrb[0].mxu0 %v1089
        %v1160 = vpop.f32.mrb[0].mxu0
        %v1161 = vadd.f32 0.0, %v1160
        %v1162 = vpop.f32.mrb[0].mxu0
        %1163 = vmatprep.mubr.f32.mxu0 0.0
        %1164 = vmatmul.mubr.f32.gmra.mrb[0].mxu0 %v1092
        %v1165 = vpop.f32.mrb[0].mxu0
        %v1166 = vadd.f32 0.0, %v1165
        %v1167 = vpop.f32.mrb[0].mxu0
        %1168 = vdwg.mxu0
        %v1170 = vsel %vm999, %v1082, 0
        %v1173 = vsel %vm999, %v1083, 0
        %1175 = vmatprep.subr.mxu0 0.0
        %1176 = vmatpush1.msra.mxu0 %v615
        %1177 = vmatprep.subr.mxu0 0.0
        %1178 = vmatpush1.msra.mxu0 %v620
        %1179 = vmatprep.subr.mxu0 0.0
        %1180 = vmatpush1.msra.mxu0 0.0
        %1181 = vmatprep.subr.mxu0 0.0
        %1182 = vmatpush1.msra.mxu0 0.0
        %1183 = vmatprep.subr.mxu0 0.0
        %1184 = vmatpush1.msra.mxu0 0.0
        %1185 = vmatprep.subr.mxu0 0.0
        %1186 = vmatpush1.msra.mxu0 0.0
        %1187 = vmatprep.subr.mxu0 0.0
        %1188 = vmatpush1.msra.mxu0 0.0
        %1189 = vmatprep.subr.mxu0 0.0
        %1190 = vmatpush1.msra.mxu0 0.0
        %1191 = vmatprep.subr.mxu0 0.0
        %1192 = vmatpush1.msra.mxu0 0.0
        %1193 = vmatprep.subr.mxu0 0.0
        %1194 = vmatpush1.msra.mxu0 0.0
        %1195 = vmatprep.subr.mxu0 0.0
        %1196 = vmatpush1.msra.mxu0 0.0
        %1197 = vmatprep.subr.mxu0 0.0
        %1198 = vmatpush1.msra.mxu0 0.0
        %1199 = vmatprep.subr.mxu0 0.0
        %1200 = vmatpush1.msra.mxu0 0.0
        %1201 = vmatprep.subr.mxu0 0.0
        %1202 = vmatpush1.msra.mxu0 0.0
        %1203 = vmatprep.subr.mxu0 0.0
        %1204 = vmatpush1.msra.mxu0 0.0
        %1205 = vmatprep.subr.mxu0 0.0
        %1206 = vmatpush1.msra.mxu0 0.0
        %1207 = vmatprep.subr.mxu0 0.0
        %1208 = vmatpush1.msra.mxu0 0.0
        %1209 = vmatprep.subr.mxu0 0.0
        %1210 = vmatpush1.msra.mxu0 0.0
        %1211 = vmatprep.subr.mxu0 0.0
        %1212 = vmatpush1.msra.mxu0 0.0
        %1213 = vmatprep.subr.mxu0 0.0
        %1214 = vmatpush1.msra.mxu0 0.0
        %1215 = vmatprep.subr.mxu0 0.0
        %1216 = vmatpush1.msra.mxu0 0.0
        %1217 = vmatprep.subr.mxu0 0.0
        %1218 = vmatpush1.msra.mxu0 0.0
        %1219 = vmatprep.subr.mxu0 0.0
        %1220 = vmatpush1.msra.mxu0 0.0
        %1221 = vmatprep.subr.mxu0 0.0
        %1222 = vmatpush1.msra.mxu0 0.0
        %1223 = vmatprep.subr.mxu0 0.0
        %1224 = vmatpush1.msra.mxu0 0.0
        %1225 = vmatprep.subr.mxu0 0.0
        %1226 = vmatpush1.msra.mxu0 0.0
        %1227 = vmatprep.subr.mxu0 0.0
        %1228 = vmatpush1.msra.mxu0 0.0
        %1229 = vmatprep.subr.mxu0 0.0
        %1230 = vmatpush1.msra.mxu0 0.0
        %1231 = vmatprep.subr.mxu0 0.0
        %1232 = vmatpush1.msra.mxu0 0.0
        %1233 = vmatprep.subr.mxu0 0.0
        %1234 = vmatpush1.msra.mxu0 0.0
        %1235 = vmatprep.subr.mxu0 0.0
        %1236 = vmatpush1.msra.mxu0 0.0
        %1237 = vmatprep.subr.mxu0 0.0
        %1238 = vmatpush1.msra.mxu0 0.0
        %1239 = vmatprep.mubr.f32.mxu0 0.0
        %1240 = vmatmul.mubr.f32.gmra.mrb[0].mxu0 %v1170
        %v1241 = vpop.f32.mrb[0].mxu0
        %v1242 = vadd.f32 0.0, %v1241
        %v1243 = vpop.f32.mrb[0].mxu0
        %1244 = vmatprep.mubr.f32.mxu0 0.0
        %1245 = vmatmul.mubr.f32.gmra.mrb[0].mxu0 %v1173
        %v1246 = vpop.f32.mrb[0].mxu0
        %v1247 = vadd.f32 0.0, %v1246
        %v1248 = vpop.f32.mrb[0].mxu0
        %1249 = vdwg.mxu0
        %v1251 = vsel %vm999, %v1084, 0
        %v1254 = vsel %vm999, %v1085, 0
        %1256 = vmatprep.subr.mxu0 0.0
        %1257 = vmatpush1.msra.mxu0 %v625
        %1258 = vmatprep.subr.mxu0 0.0
        %1259 = vmatpush1.msra.mxu0 %v630
        %1260 = vmatprep.subr.mxu0 0.0
        %1261 = vmatpush1.msra.mxu0 0.0
        %1262 = vmatprep.subr.mxu0 0.0
        %1263 = vmatpush1.msra.mxu0 0.0
        %1264 = vmatprep.subr.mxu0 0.0
        %1265 = vmatpush1.msra.mxu0 0.0
        %1266 = vmatprep.subr.mxu0 0.0
        %1267 = vmatpush1.msra.mxu0 0.0
        %1268 = vmatprep.subr.mxu0 0.0
        %1269 = vmatpush1.msra.mxu0 0.0
        %1270 = vmatprep.subr.mxu0 0.0
        %1271 = vmatpush1.msra.mxu0 0.0
        %1272 = vmatprep.subr.mxu0 0.0
        %1273 = vmatpush1.msra.mxu0 0.0
        %1274 = vmatprep.subr.mxu0 0.0
        %1275 = vmatpush1.msra.mxu0 0.0
        %1276 = vmatprep.subr.mxu0 0.0
        %1277 = vmatpush1.msra.mxu0 0.0
        %1278 = vmatprep.subr.mxu0 0.0
        %1279 = vmatpush1.msra.mxu0 0.0
        %1280 = vmatprep.subr.mxu0 0.0
        %1281 = vmatpush1.msra.mxu0 0.0
        %1282 = vmatprep.subr.mxu0 0.0
        %1283 = vmatpush1.msra.mxu0 0.0
        %1284 = vmatprep.subr.mxu0 0.0
        %1285 = vmatpush1.msra.mxu0 0.0
        %1286 = vmatprep.subr.mxu0 0.0
        %1287 = vmatpush1.msra.mxu0 0.0
        %1288 = vmatprep.subr.mxu0 0.0
        %1289 = vmatpush1.msra.mxu0 0.0
        %1290 = vmatprep.subr.mxu0 0.0
        %1291 = vmatpush1.msra.mxu0 0.0
        %1292 = vmatprep.subr.mxu0 0.0
        %1293 = vmatpush1.msra.mxu0 0.0
        %1294 = vmatprep.subr.mxu0 0.0
        %1295 = vmatpush1.msra.mxu0 0.0
        %1296 = vmatprep.subr.mxu0 0.0
        %1297 = vmatpush1.msra.mxu0 0.0
        %1298 = vmatprep.subr.mxu0 0.0
        %1299 = vmatpush1.msra.mxu0 0.0
        %1300 = vmatprep.subr.mxu0 0.0
        %1301 = vmatpush1.msra.mxu0 0.0
        %1302 = vmatprep.subr.mxu0 0.0
        %1303 = vmatpush1.msra.mxu0 0.0
        %1304 = vmatprep.subr.mxu0 0.0
        %1305 = vmatpush1.msra.mxu0 0.0
        %1306 = vmatprep.subr.mxu0 0.0
        %1307 = vmatpush1.msra.mxu0 0.0
        %1308 = vmatprep.subr.mxu0 0.0
        %1309 = vmatpush1.msra.mxu0 0.0
        %1310 = vmatprep.subr.mxu0 0.0
        %1311 = vmatpush1.msra.mxu0 0.0
        %1312 = vmatprep.subr.mxu0 0.0
        %1313 = vmatpush1.msra.mxu0 0.0
        %1314 = vmatprep.subr.mxu0 0.0
        %1315 = vmatpush1.msra.mxu0 0.0
        %1316 = vmatprep.subr.mxu0 0.0
        %1317 = vmatpush1.msra.mxu0 0.0
        %1318 = vmatprep.subr.mxu0 0.0
        %1319 = vmatpush1.msra.mxu0 0.0
        %1320 = vmatprep.mubr.f32.mxu0 0.0
        %1321 = vmatmul.mubr.f32.gmra.mrb[0].mxu0 %v1251
        %v1322 = vpop.f32.mrb[0].mxu0
        %v1323 = vadd.f32 0.0, %v1322
        %v1324 = vpop.f32.mrb[0].mxu0
        %1325 = vmatprep.mubr.f32.mxu0 0.0
        %1326 = vmatmul.mubr.f32.gmra.mrb[0].mxu0 %v1254
        %v1327 = vpop.f32.mrb[0].mxu0
        %v1328 = vadd.f32 0.0, %v1327
        %v1329 = vpop.f32.mrb[0].mxu0
        %1330 = vdwg.mxu0
        %v1332 = vsel %vm999, %v1086, 0
        %v1335 = vsel %vm999, %v1087, 0
        %1337 = vmatprep.subr.mxu0 0.0
        %1338 = vmatpush1.msra.mxu0 %v635
        %1339 = vmatprep.subr.mxu0 0.0
        %1340 = vmatpush1.msra.mxu0 %v640
        %1341 = vmatprep.subr.mxu0 0.0
        %1342 = vmatpush1.msra.mxu0 0.0
        %1343 = vmatprep.subr.mxu0 0.0
        %1344 = vmatpush1.msra.mxu0 0.0
        %1345 = vmatprep.subr.mxu0 0.0
        %1346 = vmatpush1.msra.mxu0 0.0
        %1347 = vmatprep.subr.mxu0 0.0
        %1348 = vmatpush1.msra.mxu0 0.0
        %1349 = vmatprep.subr.mxu0 0.0
        %1350 = vmatpush1.msra.mxu0 0.0
        %1351 = vmatprep.subr.mxu0 0.0
        %1352 = vmatpush1.msra.mxu0 0.0
        %1353 = vmatprep.subr.mxu0 0.0
        %1354 = vmatpush1.msra.mxu0 0.0
        %1355 = vmatprep.subr.mxu0 0.0
        %1356 = vmatpush1.msra.mxu0 0.0
        %1357 = vmatprep.subr.mxu0 0.0
        %1358 = vmatpush1.msra.mxu0 0.0
        %1359 = vmatprep.subr.mxu0 0.0
        %1360 = vmatpush1.msra.mxu0 0.0
        %1361 = vmatprep.subr.mxu0 0.0
        %1362 = vmatpush1.msra.mxu0 0.0
        %1363 = vmatprep.subr.mxu0 0.0
        %1364 = vmatpush1.msra.mxu0 0.0
        %1365 = vmatprep.subr.mxu0 0.0
        %1366 = vmatpush1.msra.mxu0 0.0
        %1367 = vmatprep.subr.mxu0 0.0
        %1368 = vmatpush1.msra.mxu0 0.0
        %1369 = vmatprep.subr.mxu0 0.0
        %1370 = vmatpush1.msra.mxu0 0.0
        %1371 = vmatprep.subr.mxu0 0.0
        %1372 = vmatpush1.msra.mxu0 0.0
        %1373 = vmatprep.subr.mxu0 0.0
        %1374 = vmatpush1.msra.mxu0 0.0
        %1375 = vmatprep.subr.mxu0 0.0
        %1376 = vmatpush1.msra.mxu0 0.0
        %1377 = vmatprep.subr.mxu0 0.0
        %1378 = vmatpush1.msra.mxu0 0.0
        %1379 = vmatprep.subr.mxu0 0.0
        %1380 = vmatpush1.msra.mxu0 0.0
        %1381 = vmatprep.subr.mxu0 0.0
        %1382 = vmatpush1.msra.mxu0 0.0
        %1383 = vmatprep.subr.mxu0 0.0
        %1384 = vmatpush1.msra.mxu0 0.0
        %1385 = vmatprep.subr.mxu0 0.0
        %1386 = vmatpush1.msra.mxu0 0.0
        %1387 = vmatprep.subr.mxu0 0.0
        %1388 = vmatpush1.msra.mxu0 0.0
        %1389 = vmatprep.subr.mxu0 0.0
        %1390 = vmatpush1.msra.mxu0 0.0
        %1391 = vmatprep.subr.mxu0 0.0
        %1392 = vmatpush1.msra.mxu0 0.0
        %1393 = vmatprep.subr.mxu0 0.0
        %1394 = vmatpush1.msra.mxu0 0.0
        %1395 = vmatprep.subr.mxu0 0.0
        %1396 = vmatpush1.msra.mxu0 0.0
        %1397 = vmatprep.subr.mxu0 0.0
        %1398 = vmatpush1.msra.mxu0 0.0
        %1399 = vmatprep.subr.mxu0 0.0
        %1400 = vmatpush1.msra.mxu0 0.0
        %1401 = vmatprep.mubr.f32.mxu0 0.0
        %1402 = vmatmul.mubr.f32.gmra.mrb[0].mxu0 %v1332
        %v1403 = vpop.f32.mrb[0].mxu0
        %v1404 = vadd.f32 0.0, %v1403
        %v1405 = vpop.f32.mrb[0].mxu0
        %1406 = vmatprep.mubr.f32.mxu0 0.0
        %1407 = vmatmul.mubr.f32.gmra.mrb[0].mxu0 %v1335
        %v1408 = vpop.f32.mrb[0].mxu0
        %v1409 = vadd.f32 0.0, %v1408
        %v1410 = vpop.f32.mrb[0].mxu0
        %1411 = vdwg.mxu0
        %s1412 = scalar_lea.vmem [#allocation7], 96
        %v1413 = vld [vmem:[%s1412] sm:$0xff]
        %v1414 = vld [vmem:[%s1412 + $0x8] sm:$0xff]
        %v1415 = vld [vmem:[%s1412 + $0x10] sm:$0xff]
        %v1416 = vld [vmem:[%s1412 + $0x18] sm:$0xff]
        %s1417 = scalar_lea.vmem %s3, 3
        %v1418 = vld [vmem:[%s1417] sm:$0x1]
        %v1420 = vlaneseq
        %v1421 = vshrl.u32 %v1420, 7
        %v1422 = vsub.s32 0, %v1421
        %v1423 = vrot.slane %v1418, %v1422
        %v1426 = vsel %vm277, %v1161, 0
        %v1429 = vsel %vm277, %v1166, 0
        %v1432 = vsel %vm277, %v1242, 0
        %v1435 = vsel %vm277, %v1247, 0
        %v1438 = vsel %vm277, %v1323, 0
        %v1441 = vsel %vm277, %v1328, 0
        %v1444 = vsel %vm277, %v1404, 0
        %v1447 = vsel %vm277, %v1409, 0
        %1449 = vmatprep.subr.mxu0 0.0
        %1450 = vmatpush1.msra.mxu0 %v1413
        %1451 = vmatprep.subr.mxu0 0.0
        %1452 = vmatpush1.msra.mxu0 %v1414
        %1453 = vmatprep.subr.mxu0 0.0
        %1454 = vmatpush1.msra.mxu0 %v1415
        %1455 = vmatprep.subr.mxu0 0.0
        %1456 = vmatpush1.msra.mxu0 %v1416
        %1457 = vmatprep.subr.mxu0 0.0
        %1458 = vmatpush1.msra.mxu0 0.0
        %1459 = vmatprep.subr.mxu0 0.0
        %1460 = vmatpush1.msra.mxu0 0.0
        %1461 = vmatprep.subr.mxu0 0.0
        %1462 = vmatpush1.msra.mxu0 0.0
        %1463 = vmatprep.subr.mxu0 0.0
        %1464 = vmatpush1.msra.mxu0 0.0
        %1465 = vmatprep.subr.mxu0 0.0
        %1466 = vmatpush1.msra.mxu0 0.0
        %1467 = vmatprep.subr.mxu0 0.0
        %1468 = vmatpush1.msra.mxu0 0.0
        %1469 = vmatprep.subr.mxu0 0.0
        %1470 = vmatpush1.msra.mxu0 0.0
        %1471 = vmatprep.subr.mxu0 0.0
        %1472 = vmatpush1.msra.mxu0 0.0
        %1473 = vmatprep.subr.mxu0 0.0
        %1474 = vmatpush1.msra.mxu0 0.0
        %1475 = vmatprep.subr.mxu0 0.0
        %1476 = vmatpush1.msra.mxu0 0.0
        %1477 = vmatprep.subr.mxu0 0.0
        %1478 = vmatpush1.msra.mxu0 0.0
        %1479 = vmatprep.subr.mxu0 0.0
        %1480 = vmatpush1.msra.mxu0 0.0
        %1481 = vmatprep.subr.mxu0 0.0
        %1482 = vmatpush1.msra.mxu0 0.0
        %1483 = vmatprep.subr.mxu0 0.0
        %1484 = vmatpush1.msra.mxu0 0.0
        %1485 = vmatprep.subr.mxu0 0.0
        %1486 = vmatpush1.msra.mxu0 0.0
        %1487 = vmatprep.subr.mxu0 0.0
        %1488 = vmatpush1.msra.mxu0 0.0
        %1489 = vmatprep.subr.mxu0 0.0
        %1490 = vmatpush1.msra.mxu0 0.0
        %1491 = vmatprep.subr.mxu0 0.0
        %1492 = vmatpush1.msra.mxu0 0.0
        %1493 = vmatprep.subr.mxu0 0.0
        %1494 = vmatpush1.msra.mxu0 0.0
        %1495 = vmatprep.subr.mxu0 0.0
        %1496 = vmatpush1.msra.mxu0 0.0
        %1497 = vmatprep.subr.mxu0 0.0
        %1498 = vmatpush1.msra.mxu0 0.0
        %1499 = vmatprep.subr.mxu0 0.0
        %1500 = vmatpush1.msra.mxu0 0.0
        %1501 = vmatprep.subr.mxu0 0.0
        %1502 = vmatpush1.msra.mxu0 0.0
        %1503 = vmatprep.subr.mxu0 0.0
        %1504 = vmatpush1.msra.mxu0 0.0
        %1505 = vmatprep.subr.mxu0 0.0
        %1506 = vmatpush1.msra.mxu0 0.0
        %1507 = vmatprep.subr.mxu0 0.0
        %1508 = vmatpush1.msra.mxu0 0.0
        %1509 = vmatprep.subr.mxu0 0.0
        %1510 = vmatpush1.msra.mxu0 0.0
        %1511 = vmatprep.subr.mxu0 0.0
        %1512 = vmatpush1.msra.mxu0 0.0
        %1513 = vmatprep.mubr.f32.mxu0 0.0
        %1514 = vmatmul.mubr.f32.gmra.mrb[0].mxu0 %v1426
        %v1515 = vpop.f32.mrb[0].mxu0
        %v1516 = vadd.f32 %v1423, %v1515
        %v1517 = vpop.f32.mrb[0].mxu0
        %1518 = vmatprep.mubr.f32.mxu0 0.0
        %1519 = vmatmul.mubr.f32.gmra.mrb[0].mxu0 %v1429
        %v1520 = vpop.f32.mrb[0].mxu0
        %v1521 = vadd.f32 %v1423, %v1520
        %v1522 = vpop.f32.mrb[0].mxu0
        %1523 = vmatprep.mubr.f32.mxu0 0.0
        %1524 = vmatmul.mubr.f32.gmra.mrb[0].mxu0 %v1432
        %v1525 = vpop.f32.mrb[0].mxu0
        %v1526 = vadd.f32 %v1423, %v1525
        %v1527 = vpop.f32.mrb[0].mxu0
        %1528 = vmatprep.mubr.f32.mxu0 0.0
        %1529 = vmatmul.mubr.f32.gmra.mrb[0].mxu0 %v1435
        %v1530 = vpop.f32.mrb[0].mxu0
        %v1531 = vadd.f32 %v1423, %v1530
        %v1532 = vpop.f32.mrb[0].mxu0
        %1533 = vmatprep.mubr.f32.mxu0 0.0
        %1534 = vmatmul.mubr.f32.gmra.mrb[0].mxu0 %v1438
        %v1535 = vpop.f32.mrb[0].mxu0
        %v1536 = vadd.f32 %v1423, %v1535
        %v1537 = vpop.f32.mrb[0].mxu0
        %1538 = vmatprep.mubr.f32.mxu0 0.0
        %1539 = vmatmul.mubr.f32.gmra.mrb[0].mxu0 %v1441
        %v1540 = vpop.f32.mrb[0].mxu0
        %v1541 = vadd.f32 %v1423, %v1540
        %v1542 = vpop.f32.mrb[0].mxu0
        %1543 = vmatprep.mubr.f32.mxu0 0.0
        %1544 = vmatmul.mubr.f32.gmra.mrb[0].mxu0 %v1444
        %v1545 = vpop.f32.mrb[0].mxu0
        %v1546 = vadd.f32 %v1423, %v1545
        %v1547 = vpop.f32.mrb[0].mxu0
        %1548 = vmatprep.mubr.f32.mxu0 0.0
        %1549 = vmatmul.mubr.f32.gmra.mrb[0].mxu0 %v1447
        %v1550 = vpop.f32.mrb[0].mxu0
        %v1551 = vadd.f32 %v1423, %v1550
        %v1552 = vpop.f32.mrb[0].mxu0
        %1553 = vdwg.mxu0
        %v1554 = vadd.f32 %v1516, %v258
        %v1555 = vadd.f32 %v1521, %v259
        %v1556 = vadd.f32 %v1526, %v260
        %v1557 = vadd.f32 %v1531, %v261
        %v1558 = vadd.f32 %v1536, %v262
        %v1559 = vadd.f32 %v1541, %v263
        %v1560 = vadd.f32 %v1546, %v264
        %v1561 = vadd.f32 %v1551, %v265
        %v1562 = vsel %vm277, %v1554, 0.0
        %1563 = vadd.xlane.f32.xlu0 %v1562
        %v1564 = vpop.xlane.xlu0 %1563
        %v1565 = vsel %vm277, %v1555, 0.0
        %1566 = vadd.xlane.f32.xlu0 %v1565
        %v1567 = vpop.xlane.xlu0 %1566
        %v1568 = vsel %vm277, %v1556, 0.0
        %1569 = vadd.xlane.f32.xlu0 %v1568
        %v1570 = vpop.xlane.xlu0 %1569
        %v1571 = vsel %vm277, %v1557, 0.0
        %1572 = vadd.xlane.f32.xlu0 %v1571
        %v1573 = vpop.xlane.xlu0 %1572
        %v1574 = vsel %vm277, %v1558, 0.0
        %1575 = vadd.xlane.f32.xlu0 %v1574
        %v1576 = vpop.xlane.xlu0 %1575
        %v1577 = vsel %vm277, %v1559, 0.0
        %1578 = vadd.xlane.f32.xlu0 %v1577
        %v1579 = vpop.xlane.xlu0 %1578
        %v1580 = vsel %vm277, %v1560, 0.0
        %1581 = vadd.xlane.f32.xlu0 %v1580
        %v1582 = vpop.xlane.xlu0 %1581
        %v1583 = vsel %vm277, %v1561, 0.0
        %1584 = vadd.xlane.f32.xlu0 %v1583
        %v1585 = vpop.xlane.xlu0 %1584
        %v1586 = vrcp.pop 32.0
        %v1587 = vmul.f32 %v1564, %v1586
        %v1588 = vmul.f32 %v1567, %v1586
        %v1589 = vmul.f32 %v1570, %v1586
        %v1590 = vmul.f32 %v1573, %v1586
        %v1591 = vmul.f32 %v1576, %v1586
        %v1592 = vmul.f32 %v1579, %v1586
        %v1593 = vmul.f32 %v1582, %v1586
        %v1594 = vmul.f32 %v1585, %v1586
        %v1595 = vsub.f32 %v1554, %v1587
        %v1596 = vsub.f32 %v1555, %v1588
        %v1597 = vsub.f32 %v1556, %v1589
        %v1598 = vsub.f32 %v1557, %v1590
        %v1599 = vsub.f32 %v1558, %v1591
        %v1600 = vsub.f32 %v1559, %v1592
        %v1601 = vsub.f32 %v1560, %v1593
        %v1602 = vsub.f32 %v1561, %v1594
        %v1603 = vmul.f32 %v1595, %v1595
        %v1604 = vmul.f32 %v1596, %v1596
        %v1605 = vmul.f32 %v1597, %v1597
        %v1606 = vmul.f32 %v1598, %v1598
        %v1607 = vmul.f32 %v1599, %v1599
        %v1608 = vmul.f32 %v1600, %v1600
        %v1609 = vmul.f32 %v1601, %v1601
        %v1610 = vmul.f32 %v1602, %v1602
        %v1611 = vsel %vm277, %v1603, 0.0
        %1612 = vadd.xlane.f32.xlu0 %v1611
        %v1613 = vpop.xlane.xlu0 %1612
        %v1614 = vsel %vm277, %v1604, 0.0
        %1615 = vadd.xlane.f32.xlu0 %v1614
        %v1616 = vpop.xlane.xlu0 %1615
        %v1617 = vsel %vm277, %v1605, 0.0
        %1618 = vadd.xlane.f32.xlu0 %v1617
        %v1619 = vpop.xlane.xlu0 %1618
        %v1620 = vsel %vm277, %v1606, 0.0
        %1621 = vadd.xlane.f32.xlu0 %v1620
        %v1622 = vpop.xlane.xlu0 %1621
        %v1623 = vsel %vm277, %v1607, 0.0
        %1624 = vadd.xlane.f32.xlu0 %v1623
        %v1625 = vpop.xlane.xlu0 %1624
        %v1626 = vsel %vm277, %v1608, 0.0
        %1627 = vadd.xlane.f32.xlu0 %v1626
        %v1628 = vpop.xlane.xlu0 %1627
        %v1629 = vsel %vm277, %v1609, 0.0
        %1630 = vadd.xlane.f32.xlu0 %v1629
        %v1631 = vpop.xlane.xlu0 %1630
        %v1632 = vsel %vm277, %v1610, 0.0
        %1633 = vadd.xlane.f32.xlu0 %v1632
        %v1634 = vpop.xlane.xlu0 %1633
        %v1635 = vmul.f32 %v1613, %v1586
        %v1636 = vmul.f32 %v1616, %v1586
        %v1637 = vmul.f32 %v1619, %v1586
        %v1638 = vmul.f32 %v1622, %v1586
        %v1639 = vmul.f32 %v1625, %v1586
        %v1640 = vmul.f32 %v1628, %v1586
        %v1641 = vmul.f32 %v1631, %v1586
        %v1642 = vmul.f32 %v1634, %v1586
        %v1643 = vadd.f32 %v1635, 1e-05
        %v1644 = vadd.f32 %v1636, 1e-05
        %v1645 = vadd.f32 %v1637, 1e-05
        %v1646 = vadd.f32 %v1638, 1e-05
        %v1647 = vadd.f32 %v1639, 1e-05
        %v1648 = vadd.f32 %v1640, 1e-05
        %v1649 = vadd.f32 %v1641, 1e-05
        %v1650 = vadd.f32 %v1642, 1e-05
        %v1651 = vrsqrt.pop %v1643
        %v1652 = vrsqrt.pop %v1644
        %v1653 = vrsqrt.pop %v1645
        %v1654 = vrsqrt.pop %v1646
        %v1655 = vrsqrt.pop %v1647
        %v1656 = vrsqrt.pop %v1648
        %v1657 = vrsqrt.pop %v1649
        %v1658 = vrsqrt.pop %v1650
        %v1659 = vmul.f32 %v1595, %v1651
        %v1660 = vmul.f32 %v1596, %v1652
        %v1661 = vmul.f32 %v1597, %v1653
        %v1662 = vmul.f32 %v1598, %v1654
        %v1663 = vmul.f32 %v1599, %v1655
        %v1664 = vmul.f32 %v1600, %v1656
        %v1665 = vmul.f32 %v1601, %v1657
        %v1666 = vmul.f32 %v1602, %v1658
        %s1667 = scalar_lea.vmem [#allocation7], 128
        %v1668 = vld [vmem:[%s1667] sm:$0xff]
        %v1669 = vld [vmem:[%s1667 + $0x8] sm:$0xff]
        %v1670 = vld [vmem:[%s1667 + $0x10] sm:$0xff]
        %v1671 = vld [vmem:[%s1667 + $0x18] sm:$0xff]
        %s1672 = scalar_lea.vmem %s3, 4
        %v1673 = vld [vmem:[%s1672] sm:$0x1]
        %v1675 = vlaneseq
        %v1676 = vshrl.u32 %v1675, 7
        %v1677 = vsub.s32 0, %v1676
        %v1678 = vrot.slane %v1673, %v1677
        %v1681 = vsel %vm277, %v1659, 0
        %v1684 = vsel %vm277, %v1660, 0
        %v1687 = vsel %vm277, %v1661, 0
        %v1690 = vsel %vm277, %v1662, 0
        %v1693 = vsel %vm277, %v1663, 0
        %v1696 = vsel %vm277, %v1664, 0
        %v1699 = vsel %vm277, %v1665, 0
        %v1702 = vsel %vm277, %v1666, 0
        %1704 = vmatprep.subr.mxu0 0.0
        %1705 = vmatpush1.msra.mxu0 %v1668
        %1706 = vmatprep.subr.mxu0 0.0
        %1707 = vmatpush1.msra.mxu0 %v1669
        %1708 = vmatprep.subr.mxu0 0.0
        %1709 = vmatpush1.msra.mxu0 %v1670
        %1710 = vmatprep.subr.mxu0 0.0
        %1711 = vmatpush1.msra.mxu0 %v1671
        %1712 = vmatprep.subr.mxu0 0.0
        %1713 = vmatpush1.msra.mxu0 0.0
        %1714 = vmatprep.subr.mxu0 0.0
        %1715 = vmatpush1.msra.mxu0 0.0
        %1716 = vmatprep.subr.mxu0 0.0
        %1717 = vmatpush1.msra.mxu0 0.0
        %1718 = vmatprep.subr.mxu0 0.0
        %1719 = vmatpush1.msra.mxu0 0.0
        %1720 = vmatprep.subr.mxu0 0.0
        %1721 = vmatpush1.msra.mxu0 0.0
        %1722 = vmatprep.subr.mxu0 0.0
        %1723 = vmatpush1.msra.mxu0 0.0
        %1724 = vmatprep.subr.mxu0 0.0
        %1725 = vmatpush1.msra.mxu0 0.0
        %1726 = vmatprep.subr.mxu0 0.0
        %1727 = vmatpush1.msra.mxu0 0.0
        %1728 = vmatprep.subr.mxu0 0.0
        %1729 = vmatpush1.msra.mxu0 0.0
        %1730 = vmatprep.subr.mxu0 0.0
        %1731 = vmatpush1.msra.mxu0 0.0
        %1732 = vmatprep.subr.mxu0 0.0
        %1733 = vmatpush1.msra.mxu0 0.0
        %1734 = vmatprep.subr.mxu0 0.0
        %1735 = vmatpush1.msra.mxu0 0.0
        %1736 = vmatprep.subr.mxu0 0.0
        %1737 = vmatpush1.msra.mxu0 0.0
        %1738 = vmatprep.subr.mxu0 0.0
        %1739 = vmatpush1.msra.mxu0 0.0
        %1740 = vmatprep.subr.mxu0 0.0
        %1741 = vmatpush1.msra.mxu0 0.0
        %1742 = vmatprep.subr.mxu0 0.0
        %1743 = vmatpush1.msra.mxu0 0.0
        %1744 = vmatprep.subr.mxu0 0.0
        %1745 = vmatpush1.msra.mxu0 0.0
        %1746 = vmatprep.subr.mxu0 0.0
        %1747 = vmatpush1.msra.mxu0 0.0
        %1748 = vmatprep.subr.mxu0 0.0
        %1749 = vmatpush1.msra.mxu0 0.0
        %1750 = vmatprep.subr.mxu0 0.0
        %1751 = vmatpush1.msra.mxu0 0.0
        %1752 = vmatprep.subr.mxu0 0.0
        %1753 = vmatpush1.msra.mxu0 0.0
        %1754 = vmatprep.subr.mxu0 0.0
        %1755 = vmatpush1.msra.mxu0 0.0
        %1756 = vmatprep.subr.mxu0 0.0
        %1757 = vmatpush1.msra.mxu0 0.0
        %1758 = vmatprep.subr.mxu0 0.0
        %1759 = vmatpush1.msra.mxu0 0.0
        %1760 = vmatprep.subr.mxu0 0.0
        %1761 = vmatpush1.msra.mxu0 0.0
        %1762 = vmatprep.subr.mxu0 0.0
        %1763 = vmatpush1.msra.mxu0 0.0
        %1764 = vmatprep.subr.mxu0 0.0
        %1765 = vmatpush1.msra.mxu0 0.0
        %1766 = vmatprep.subr.mxu0 0.0
        %1767 = vmatpush1.msra.mxu0 0.0
        %1768 = vmatprep.mubr.f32.mxu0 0.0
        %1769 = vmatmul.mubr.f32.gmra.mrb[0].mxu0 %v1681
        %v1770 = vpop.f32.mrb[0].mxu0
        %v1771 = vadd.f32 %v1678, %v1770
        %v1772 = vpop.f32.mrb[0].mxu0
        %1773 = vmatprep.mubr.f32.mxu0 0.0
        %1774 = vmatmul.mubr.f32.gmra.mrb[0].mxu0 %v1684
        %v1775 = vpop.f32.mrb[0].mxu0
        %v1776 = vadd.f32 %v1678, %v1775
        %v1777 = vpop.f32.mrb[0].mxu0
        %1778 = vmatprep.mubr.f32.mxu0 0.0
        %1779 = vmatmul.mubr.f32.gmra.mrb[0].mxu0 %v1687
        %v1780 = vpop.f32.mrb[0].mxu0
        %v1781 = vadd.f32 %v1678, %v1780
        %v1782 = vpop.f32.mrb[0].mxu0
        %1783 = vmatprep.mubr.f32.mxu0 0.0
        %1784 = vmatmul.mubr.f32.gmra.mrb[0].mxu0 %v1690
        %v1785 = vpop.f32.mrb[0].mxu0
        %v1786 = vadd.f32 %v1678, %v1785
        %v1787 = vpop.f32.mrb[0].mxu0
        %1788 = vmatprep.mubr.f32.mxu0 0.0
        %1789 = vmatmul.mubr.f32.gmra.mrb[0].mxu0 %v1693
        %v1790 = vpop.f32.mrb[0].mxu0
        %v1791 = vadd.f32 %v1678, %v1790
        %v1792 = vpop.f32.mrb[0].mxu0
        %1793 = vmatprep.mubr.f32.mxu0 0.0
        %1794 = vmatmul.mubr.f32.gmra.mrb[0].mxu0 %v1696
        %v1795 = vpop.f32.mrb[0].mxu0
        %v1796 = vadd.f32 %v1678, %v1795
        %v1797 = vpop.f32.mrb[0].mxu0
        %1798 = vmatprep.mubr.f32.mxu0 0.0
        %1799 = vmatmul.mubr.f32.gmra.mrb[0].mxu0 %v1699
        %v1800 = vpop.f32.mrb[0].mxu0
        %v1801 = vadd.f32 %v1678, %v1800
        %v1802 = vpop.f32.mrb[0].mxu0
        %1803 = vmatprep.mubr.f32.mxu0 0.0
        %1804 = vmatmul.mubr.f32.gmra.mrb[0].mxu0 %v1702
        %v1805 = vpop.f32.mrb[0].mxu0
        %v1806 = vadd.f32 %v1678, %v1805
        %v1807 = vpop.f32.mrb[0].mxu0
        %1808 = vdwg.mxu0
        %v1809 = vmax.f32 %v1771, 0.0
        %v1810 = vmax.f32 %v1776, 0.0
        %v1811 = vmax.f32 %v1781, 0.0
        %v1812 = vmax.f32 %v1786, 0.0
        %v1813 = vmax.f32 %v1791, 0.0
        %v1814 = vmax.f32 %v1796, 0.0
        %v1815 = vmax.f32 %v1801, 0.0
        %v1816 = vmax.f32 %v1806, 0.0
        %s1817 = scalar_lea.vmem [#allocation7], 160
        %v1818 = vld [vmem:[%s1817] sm:$0xff]
        %v1819 = vld [vmem:[%s1817 + $0x8] sm:$0xff]
        %v1820 = vld [vmem:[%s1817 + $0x10] sm:$0xff]
        %v1821 = vld [vmem:[%s1817 + $0x18] sm:$0xff]
        %s1822 = scalar_lea.vmem %s3, 5
        %v1823 = vld [vmem:[%s1822] sm:$0x1]
        %v1825 = vlaneseq
        %v1826 = vshrl.u32 %v1825, 7
        %v1827 = vsub.s32 0, %v1826
        %v1828 = vrot.slane %v1823, %v1827
        %v1831 = vsel %vm277, %v1809, 0
        %v1834 = vsel %vm277, %v1810, 0
        %v1837 = vsel %vm277, %v1811, 0
        %v1840 = vsel %vm277, %v1812, 0
        %v1843 = vsel %vm277, %v1813, 0
        %v1846 = vsel %vm277, %v1814, 0
        %v1849 = vsel %vm277, %v1815, 0
        %v1852 = vsel %vm277, %v1816, 0
        %1854 = vmatprep.subr.mxu0 0.0
        %1855 = vmatpush1.msra.mxu0 %v1818
        %1856 = vmatprep.subr.mxu0 0.0
        %1857 = vmatpush1.msra.mxu0 %v1819
        %1858 = vmatprep.subr.mxu0 0.0
        %1859 = vmatpush1.msra.mxu0 %v1820
        %1860 = vmatprep.subr.mxu0 0.0
        %1861 = vmatpush1.msra.mxu0 %v1821
        %1862 = vmatprep.subr.mxu0 0.0
        %1863 = vmatpush1.msra.mxu0 0.0
        %1864 = vmatprep.subr.mxu0 0.0
        %1865 = vmatpush1.msra.mxu0 0.0
        %1866 = vmatprep.subr.mxu0 0.0
        %1867 = vmatpush1.msra.mxu0 0.0
        %1868 = vmatprep.subr.mxu0 0.0
        %1869 = vmatpush1.msra.mxu0 0.0
        %1870 = vmatprep.subr.mxu0 0.0
        %1871 = vmatpush1.msra.mxu0 0.0
        %1872 = vmatprep.subr.mxu0 0.0
        %1873 = vmatpush1.msra.mxu0 0.0
        %1874 = vmatprep.subr.mxu0 0.0
        %1875 = vmatpush1.msra.mxu0 0.0
        %1876 = vmatprep.subr.mxu0 0.0
        %1877 = vmatpush1.msra.mxu0 0.0
        %1878 = vmatprep.subr.mxu0 0.0
        %1879 = vmatpush1.msra.mxu0 0.0
        %1880 = vmatprep.subr.mxu0 0.0
        %1881 = vmatpush1.msra.mxu0 0.0
        %1882 = vmatprep.subr.mxu0 0.0
        %1883 = vmatpush1.msra.mxu0 0.0
        %1884 = vmatprep.subr.mxu0 0.0
        %1885 = vmatpush1.msra.mxu0 0.0
        %1886 = vmatprep.subr.mxu0 0.0
        %1887 = vmatpush1.msra.mxu0 0.0
        %1888 = vmatprep.subr.mxu0 0.0
        %1889 = vmatpush1.msra.mxu0 0.0
        %1890 = vmatprep.subr.mxu0 0.0
        %1891 = vmatpush1.msra.mxu0 0.0
        %1892 = vmatprep.subr.mxu0 0.0
        %1893 = vmatpush1.msra.mxu0 0.0
        %1894 = vmatprep.subr.mxu0 0.0
        %1895 = vmatpush1.msra.mxu0 0.0
        %1896 = vmatprep.subr.mxu0 0.0
        %1897 = vmatpush1.msra.mxu0 0.0
        %1898 = vmatprep.subr.mxu0 0.0
        %1899 = vmatpush1.msra.mxu0 0.0
        %1900 = vmatprep.subr.mxu0 0.0
        %1901 = vmatpush1.msra.mxu0 0.0
        %1902 = vmatprep.subr.mxu0 0.0
        %1903 = vmatpush1.msra.mxu0 0.0
        %1904 = vmatprep.subr.mxu0 0.0
        %1905 = vmatpush1.msra.mxu0 0.0
        %1906 = vmatprep.subr.mxu0 0.0
        %1907 = vmatpush1.msra.mxu0 0.0
        %1908 = vmatprep.subr.mxu0 0.0
        %1909 = vmatpush1.msra.mxu0 0.0
        %1910 = vmatprep.subr.mxu0 0.0
        %1911 = vmatpush1.msra.mxu0 0.0
        %1912 = vmatprep.subr.mxu0 0.0
        %1913 = vmatpush1.msra.mxu0 0.0
        %1914 = vmatprep.subr.mxu0 0.0
        %1915 = vmatpush1.msra.mxu0 0.0
        %1916 = vmatprep.subr.mxu0 0.0
        %1917 = vmatpush1.msra.mxu0 0.0
        %1918 = vmatprep.mubr.f32.mxu0 0.0
        %1919 = vmatmul.mubr.f32.gmra.mrb[0].mxu0 %v1831
        %v1920 = vpop.f32.mrb[0].mxu0
        %v1921 = vadd.f32 %v1828, %v1920
        %v1922 = vpop.f32.mrb[0].mxu0
        %1923 = vmatprep.mubr.f32.mxu0 0.0
        %1924 = vmatmul.mubr.f32.gmra.mrb[0].mxu0 %v1834
        %v1925 = vpop.f32.mrb[0].mxu0
        %v1926 = vadd.f32 %v1828, %v1925
        %v1927 = vpop.f32.mrb[0].mxu0
        %1928 = vmatprep.mubr.f32.mxu0 0.0
        %1929 = vmatmul.mubr.f32.gmra.mrb[0].mxu0 %v1837
        %v1930 = vpop.f32.mrb[0].mxu0
        %v1931 = vadd.f32 %v1828, %v1930
        %v1932 = vpop.f32.mrb[0].mxu0
        %1933 = vmatprep.mubr.f32.mxu0 0.0
        %1934 = vmatmul.mubr.f32.gmra.mrb[0].mxu0 %v1840
        %v1935 = vpop.f32.mrb[0].mxu0
        %v1936 = vadd.f32 %v1828, %v1935
        %v1937 = vpop.f32.mrb[0].mxu0
        %1938 = vmatprep.mubr.f32.mxu0 0.0
        %1939 = vmatmul.mubr.f32.gmra.mrb[0].mxu0 %v1843
        %v1940 = vpop.f32.mrb[0].mxu0
        %v1941 = vadd.f32 %v1828, %v1940
        %v1942 = vpop.f32.mrb[0].mxu0
        %1943 = vmatprep.mubr.f32.mxu0 0.0
        %1944 = vmatmul.mubr.f32.gmra.mrb[0].mxu0 %v1846
        %v1945 = vpop.f32.mrb[0].mxu0
        %v1946 = vadd.f32 %v1828, %v1945
        %v1947 = vpop.f32.mrb[0].mxu0
        %1948 = vmatprep.mubr.f32.mxu0 0.0
        %1949 = vmatmul.mubr.f32.gmra.mrb[0].mxu0 %v1849
        %v1950 = vpop.f32.mrb[0].mxu0
        %v1951 = vadd.f32 %v1828, %v1950
        %v1952 = vpop.f32.mrb[0].mxu0
        %1953 = vmatprep.mubr.f32.mxu0 0.0
        %1954 = vmatmul.mubr.f32.gmra.mrb[0].mxu0 %v1852
        %v1955 = vpop.f32.mrb[0].mxu0
        %v1956 = vadd.f32 %v1828, %v1955
        %v1957 = vpop.f32.mrb[0].mxu0
        %1958 = vdwg.mxu0
        %v1959 = vadd.f32 %v1921, %v1659
        %v1960 = vadd.f32 %v1926, %v1660
        %v1961 = vadd.f32 %v1931, %v1661
        %v1962 = vadd.f32 %v1936, %v1662
        %v1963 = vadd.f32 %v1941, %v1663
        %v1964 = vadd.f32 %v1946, %v1664
        %v1965 = vadd.f32 %v1951, %v1665
        %v1966 = vadd.f32 %v1956, %v1666
        %v1967 = vsel %vm277, %v1959, 0.0
        %1968 = vadd.xlane.f32.xlu0 %v1967
        %v1969 = vpop.xlane.xlu0 %1968
        %v1970 = vsel %vm277, %v1960, 0.0
        %1971 = vadd.xlane.f32.xlu0 %v1970
        %v1972 = vpop.xlane.xlu0 %1971
        %v1973 = vsel %vm277, %v1961, 0.0
        %1974 = vadd.xlane.f32.xlu0 %v1973
        %v1975 = vpop.xlane.xlu0 %1974
        %v1976 = vsel %vm277, %v1962, 0.0
        %1977 = vadd.xlane.f32.xlu0 %v1976
        %v1978 = vpop.xlane.xlu0 %1977
        %v1979 = vsel %vm277, %v1963, 0.0
        %1980 = vadd.xlane.f32.xlu0 %v1979
        %v1981 = vpop.xlane.xlu0 %1980
        %v1982 = vsel %vm277, %v1964, 0.0
        %1983 = vadd.xlane.f32.xlu0 %v1982
        %v1984 = vpop.xlane.xlu0 %1983
        %v1985 = vsel %vm277, %v1965, 0.0
        %1986 = vadd.xlane.f32.xlu0 %v1985
        %v1987 = vpop.xlane.xlu0 %1986
        %v1988 = vsel %vm277, %v1966, 0.0
        %1989 = vadd.xlane.f32.xlu0 %v1988
        %v1990 = vpop.xlane.xlu0 %1989
        %v1991 = vmul.f32 %v1969, %v1586
        %v1992 = vmul.f32 %v1972, %v1586
        %v1993 = vmul.f32 %v1975, %v1586
        %v1994 = vmul.f32 %v1978, %v1586
        %v1995 = vmul.f32 %v1981, %v1586
        %v1996 = vmul.f32 %v1984, %v1586
        %v1997 = vmul.f32 %v1987, %v1586
        %v1998 = vmul.f32 %v1990, %v1586
        %v1999 = vsub.f32 %v1959, %v1991
        %v2000 = vsub.f32 %v1960, %v1992
        %v2001 = vsub.f32 %v1961, %v1993
        %v2002 = vsub.f32 %v1962, %v1994
        %v2003 = vsub.f32 %v1963, %v1995
        %v2004 = vsub.f32 %v1964, %v1996
        %v2005 = vsub.f32 %v1965, %v1997
        %v2006 = vsub.f32 %v1966, %v1998
        %v2007 = vmul.f32 %v1999, %v1999
        %v2008 = vmul.f32 %v2000, %v2000
        %v2009 = vmul.f32 %v2001, %v2001
        %v2010 = vmul.f32 %v2002, %v2002
        %v2011 = vmul.f32 %v2003, %v2003
        %v2012 = vmul.f32 %v2004, %v2004
        %v2013 = vmul.f32 %v2005, %v2005
        %v2014 = vmul.f32 %v2006, %v2006
        %v2015 = vsel %vm277, %v2007, 0.0
        %2016 = vadd.xlane.f32.xlu0 %v2015
        %v2017 = vpop.xlane.xlu0 %2016
        %v2018 = vsel %vm277, %v2008, 0.0
        %2019 = vadd.xlane.f32.xlu0 %v2018
        %v2020 = vpop.xlane.xlu0 %2019
        %v2021 = vsel %vm277, %v2009, 0.0
        %2022 = vadd.xlane.f32.xlu0 %v2021
        %v2023 = vpop.xlane.xlu0 %2022
        %v2024 = vsel %vm277, %v2010, 0.0
        %2025 = vadd.xlane.f32.xlu0 %v2024
        %v2026 = vpop.xlane.xlu0 %2025
        %v2027 = vsel %vm277, %v2011, 0.0
        %2028 = vadd.xlane.f32.xlu0 %v2027
        %v2029 = vpop.xlane.xlu0 %2028
        %v2030 = vsel %vm277, %v2012, 0.0
        %2031 = vadd.xlane.f32.xlu0 %v2030
        %v2032 = vpop.xlane.xlu0 %2031
        %v2033 = vsel %vm277, %v2013, 0.0
        %2034 = vadd.xlane.f32.xlu0 %v2033
        %v2035 = vpop.xlane.xlu0 %2034
        %v2036 = vsel %vm277, %v2014, 0.0
        %2037 = vadd.xlane.f32.xlu0 %v2036
        %v2038 = vpop.xlane.xlu0 %2037
        %v2039 = vmul.f32 %v2017, %v1586
        %v2040 = vmul.f32 %v2020, %v1586
        %v2041 = vmul.f32 %v2023, %v1586
        %v2042 = vmul.f32 %v2026, %v1586
        %v2043 = vmul.f32 %v2029, %v1586
        %v2044 = vmul.f32 %v2032, %v1586
        %v2045 = vmul.f32 %v2035, %v1586
        %v2046 = vmul.f32 %v2038, %v1586
        %v2047 = vadd.f32 %v2039, 1e-05
        %v2048 = vadd.f32 %v2040, 1e-05
        %v2049 = vadd.f32 %v2041, 1e-05
        %v2050 = vadd.f32 %v2042, 1e-05
        %v2051 = vadd.f32 %v2043, 1e-05
        %v2052 = vadd.f32 %v2044, 1e-05
        %v2053 = vadd.f32 %v2045, 1e-05
        %v2054 = vadd.f32 %v2046, 1e-05
        %v2055 = vrsqrt.pop %v2047
        %v2056 = vrsqrt.pop %v2048
        %v2057 = vrsqrt.pop %v2049
        %v2058 = vrsqrt.pop %v2050
        %v2059 = vrsqrt.pop %v2051
        %v2060 = vrsqrt.pop %v2052
        %v2061 = vrsqrt.pop %v2053
        %v2062 = vrsqrt.pop %v2054
        %v2063 = vmul.f32 %v1999, %v2055
        %v2064 = vmul.f32 %v2000, %v2056
        %v2065 = vmul.f32 %v2001, %v2057
        %v2066 = vmul.f32 %v2002, %v2058
        %v2067 = vmul.f32 %v2003, %v2059
        %v2068 = vmul.f32 %v2004, %v2060
        %v2069 = vmul.f32 %v2005, %v2061
        %v2070 = vmul.f32 %v2006, %v2062
        %2071 = vst.msk [vmem:[%s245] sm:$0xff] %vm277, %v2063
        %2072 = vst.msk [vmem:[%s245 + $0x8] sm:$0xff] %vm277, %v2064
        %2073 = vst.msk [vmem:[%s245 + $0x10] sm:$0xff] %vm277, %v2065
        %2074 = vst.msk [vmem:[%s245 + $0x18] sm:$0xff] %vm277, %v2066
        %2075 = vst.msk [vmem:[%s245 + $0x20] sm:$0xff] %vm277, %v2067
        %2076 = vst.msk [vmem:[%s245 + $0x28] sm:$0xff] %vm277, %v2068
        %2077 = vst.msk [vmem:[%s245 + $0x30] sm:$0xff] %vm277, %v2069
        %2078 = vst.msk [vmem:[%s245 + $0x38] sm:$0xff] %vm277, %v2070
        %s2079 = sand.u32 %s119, 1
        %s2080 = scalar_lea.sflag [#allocation4], %s2079
        %s2081 = sand.u32 %s119, 1
        %s2082 = smul.addr %s2081, 64
        %s2083 = scalar_lea.vmem [#allocation8], %s2082
        // Predicated region
        $region49: #{tpu_custom_call.1} parent=35 // pred_check
          %p2084 = pneg %p129
        $region50: #{tpu_custom_call.1} parent=35 // pred_check_branch
          %2086 = sbr.rel (%p2084) target = $region52
        $region51: #{tpu_custom_call.1} parent=35 // pred_region
          %s2087 = smul.u32 4, %s22
          %s2089 = ssub.s32 1024, 1024
          %2090 = vsyncadd %s2080, %s2089
          %s2091 = smul.addr %s2087, 2
          %s2092 = smul.addr %s2091, 128
          %s2093 = scalar_lea.hbm %s4, %s2092
          %s2094 = sshll.u32 %s2083, 4
          %s2095 = int_to_ptr.vmem [resolvable:$true] %s2094
          %2100 = dma.vmem_to_hbm [thread:$0]  %s2095, 1024, %s2093, %s2080, 128, 128, 8
        $region52: #{tpu_custom_call.1} parent=35 // pred_fallthru
          _
      $region36: #{tpu_custom_call.1} parent=5 // pred_fallthru
        _
      %p2101 = scmp.le.s32.totalorder 2, %s17
      // Predicated region
      $region53: #{tpu_custom_call.1} parent=5 // pred_check
        %p2102 = pneg %p2101
      $region54: #{tpu_custom_call.1} parent=5 // pred_check_branch
        %2104 = sbr.rel (%p2102) target = $region56
      $region55: #{tpu_custom_call.1} parent=5 // pred_region
        %s2105 = ssub.s32 %s17, 2
        // Predicated region
        $region57: #{tpu_custom_call.1} parent=55 // pred_check
          %p2106 = pneg %p135
        $region58: #{tpu_custom_call.1} parent=55 // pred_check_branch
          %2108 = sbr.rel (%p2106) target = $region60
        $region59: #{tpu_custom_call.1} parent=55 // pred_region
          %s2109 = sand.u32 %s120, 1
          %s2110 = scalar_lea.sflag [#allocation4], %s2109
          %s2111 = sand.u32 %s120, 1
          %s2112 = smul.addr %s2111, 64
          %s2113 = scalar_lea.vmem [#allocation8], %s2112
          %2114 = dma.done %s2110, 1024
        $region60: #{tpu_custom_call.1} parent=55 // pred_fallthru
          _
      $region56: #{tpu_custom_call.1} parent=5 // pred_fallthru
        _
    $region6: #{tpu_custom_call.1} parent=1 // loop_footer
      %s21 = sadd.s32 1, %s17
    $region7: #{tpu_custom_call.1} parent=1 // loop_footer_branch
      %16 = sbr.rel target = $region3
    $region8: #{tpu_custom_call.1} parent=1 // loop_exit
      _
    %2115 = vsyncpa [#allocation3], 1
    %s2116 = scalar_lea.sflag [#allocation3], 1
    %2117 = vsyncpa %s2116, 1
    %2118 = vsyncpa [#allocation6], 1
    %2119 = vsyncpa [#allocation4], 1
    %s2120 = scalar_lea.sflag [#allocation4], 1
    %2121 = vsyncpa %s2120, 1

</llo_original>
